<compile_context>
chip_gen: v5e
topology: v5e:2x2
jax: 0.10.0
libtpu: 0.0.40
codegen_flags: <defaults>
</compile_context>

<pallas_src>
import jax
import jax.numpy as jnp
import numpy as np
from jax.experimental import pallas as pl
from jax.experimental.pallas import tpu as pltpu

Scale_exponent = 1
BS_NUM = 16 * Scale_exponent          # BS_num_per_Layout
NT_NUM = 16
F = 2 * NT_NUM                        # node / edge-attr feature dim = 32
HID = 32                              # msg-MLP hidden / output dim
UE_PER_BS = 2
UE_NUM = BS_NUM * UE_PER_BS           # 32
E = UE_NUM                            # edges per edge type
E4 = 4 * E                            # all 4 edge types stacked -> 128 msg rows
NDST = 2 * BS_NUM + 2 * UE_NUM        # 96 stacked update rows (bs,bs,ue,ue)
NSRC = UE_NUM + BS_NUM                # 48 source nodes (UE block then BS block)
NLAYER = 3
NEG_SLOPE = 0.01                      # nn.LeakyReLU default slope
BATCH = 4                             # independent layouts per kernel call


def _leaky(x):
    # max(x, 0.01*x) == LeakyReLU(0.01) exactly; 2 VPU ops instead of 3.
    return jnp.maximum(x, NEG_SLOPE * x)


def _mm(a, b):
    return jnp.dot(a, b, preferred_element_type=jnp.float32)


# ----------------------------------------------------------------------------
# Fused Pallas kernel (one grid step = one full layout forward)
# ----------------------------------------------------------------------------
def cgnn_kernel(xn_ref, ea_ref, gsrc_ref, sdst_ref, pbf_ref, qpool_ref,
                w_ref, b_ref, out_ref):
    # ---- unpack packed weights (static slices of the packed refs) ----
    w1m_a, w1m_b, w2m = w_ref[0], w_ref[1], w_ref[2]        # msg MLP
    w1u_a, w1u_b, w2u = w_ref[3], w_ref[4], w_ref[5]        # update MLP
    bf_w = w_ref[6]                                          # bf Linear
    b1m, b2m, b1u, b2u, bf_b = (b_ref[0], b_ref[1], b_ref[2],
                                b_ref[3], b_ref[4])

    gsrc = gsrc_ref[...]          # [4E, NSRC]  one-hot source gather (4 edge types)
    sdst = sdst_ref[...]          # [NDST, 4E]  block-diag per-edge-type scatter-sum
    nodes = xn_ref[...]           # [NSRC, F]   rows 0:UE_NUM = UE, rest = BS

    # edge_attr contribution to the msg-MLP first layer is layer-invariant:
    # fold ea @ W1m_b + b1m into a bias once (instead of once per layer).
    msg_bias = _mm(ea_ref[...], w1m_b) + b1m                 # [4E, HID]

    for _ in range(NLAYER):                                  # 3 unrolled layers
        # gather folded into msg-MLP layer 1: (gsrc@nodes)@W == gsrc@(nodes@W)
        h = _leaky(_mm(gsrc, _mm(nodes, w1m_a)) + msg_bias)  # [4E, HID]
        msg = _leaky(_mm(h, w2m) + b2m)                      # msg MLP layer 2   [4E, HID]
        aggr = _mm(sdst, msg)                                # per-edge-type scatter-sum [NDST, HID]

        ue = nodes[0:UE_NUM]                                 # [UE_NUM, F]
        bs = nodes[UE_NUM:NSRC]                              # [BS_NUM, F]
        # dst-feature projection computed per node type, then tiled (bs,bs,ue,ue)
        bs_h = _mm(bs, w1u_a)                                # [BS_NUM, HID]
        ue_h = _mm(ue, w1u_a)                                # [UE_NUM, HID]
        xdst_h = jnp.concatenate([bs_h, bs_h, ue_h, ue_h], axis=0)   # [NDST, HID]

        h2 = _leaky(xdst_h + _mm(aggr, w1u_b) + b1u)
        upd = _leaky(_mm(h2, w2u) + b2u)                     # update MLP        [NDST, F]
        # HeteroConv aggr='sum': sum per-edge-type updates per dst node type
        new_bs = upd[0:BS_NUM] + upd[BS_NUM:2 * BS_NUM]
        new_ue = upd[2 * BS_NUM:2 * BS_NUM + UE_NUM] + upd[2 * BS_NUM + UE_NUM:NDST]
        nodes = jnp.concatenate([new_ue, new_bs], axis=0)    # carry stacked state

    ue = nodes[0:UE_NUM]
    # ---- bf_output: gather served-UE rows (BS-major), Linear -> Tanh,
    #      per-BS PowerConstraint (divide by Frobenius norm only if > 1) ----
    x = _mm(pbf_ref[...], ue)                                # [E, F]
    y = jnp.tanh(_mm(x, bf_w) + bf_b)                        # [E, F]
    # per-BS ||.||_F^2 broadcast back to each row of that BS (one [E,E]x[E,F]
    # matmul + lane reduce; no N=1 matmuls)
    nsq = jnp.sum(_mm(qpool_ref[...], y * y), axis=1, keepdims=True)   # [E, 1]
    scale = jax.lax.rsqrt(jnp.maximum(nsq, 1.0))             # == 1/max(norm, 1)
    out_ref[...] = y * scale


# ----------------------------------------------------------------------------
# pallas_call wrapper: grid over the batch of layouts, weights shared
# ----------------------------------------------------------------------------
def cgnn_forward(x_nodes, ea_all, topo, w_pack, b_pack):
    B = x_nodes.shape[0]

    def full_spec(a):
        return pl.BlockSpec(a.shape, lambda b, _nd=a.ndim: (0,) * _nd)

    out = pl.pallas_call(
        cgnn_kernel,
        out_shape=jax.ShapeDtypeStruct((B, E, F), jnp.float32),
        grid=(B,),
        in_specs=[
            pl.BlockSpec((None, NSRC, F), lambda b: (b, 0, 0)),     # stacked node feats
            pl.BlockSpec((None, E4, F), lambda b: (b, 0, 0)),       # stacked edge attrs
            full_spec(topo['g_src']),
            full_spec(topo['s_dst']),
            full_spec(topo['p_bf']),
            full_spec(topo['q_pool']),
            full_spec(w_pack),
            full_spec(b_pack),
        ],
        out_specs=pl.BlockSpec((None, E, F), lambda b: (b, 0, 0)),
        compiler_params=pltpu.CompilerParams(
            dimension_semantics=("parallel",)),                      # both TCs on v7x
    )(x_nodes, ea_all, topo['g_src'], topo['s_dst'], topo['p_bf'],
      topo['q_pool'], w_pack, b_pack)
    # [B, E, F] in BS-major edge order == per-BS beamforming matrices.
    # TODO(synk): PyTorch builds a Python list with torch.empty for BSs serving
    # no UE; here every BS serves exactly UE_PER_BS UEs so a fixed reshape works.
    return out.reshape(B, BS_NUM, UE_PER_BS, F)


# ----------------------------------------------------------------------------
# Host-side topology (one-hot operators) and parameter packing
# ----------------------------------------------------------------------------
def _onehot_rows(idx, n):         # [len(idx), n]
    return (idx[:, None] == jnp.arange(n, dtype=idx.dtype)[None, :]).astype(jnp.float32)


def _scatter_t(idx, n):           # [n, len(idx)]
    return (jnp.arange(n, dtype=idx.dtype)[:, None] == idx[None, :]).astype(jnp.float32)


def build_topology(bs_of_edge, ue_serv, ue_interf):
    # source gather for the 4 stacked edge types (UE nodes 0..UE_NUM-1, BS nodes after)
    g_src = jnp.concatenate([
        _onehot_rows(ue_serv, NSRC),                 # ('UE','service','BS')
        _onehot_rows(ue_interf, NSRC),               # ('UE','interf','BS')
        _onehot_rows(UE_NUM + bs_of_edge, NSRC),     # ('BS','service','UE')
        _onehot_rows(UE_NUM + bs_of_edge, NSRC),     # ('BS','interf','UE')
    ], axis=0)                                       # [4E, NSRC]
    # block-diagonal per-edge-type scatter-sum
    s_dst = jnp.zeros((NDST, E4), jnp.float32)
    s_dst = s_dst.at[0:BS_NUM, 0:E].set(_scatter_t(bs_of_edge, BS_NUM))
    s_dst = s_dst.at[BS_NUM:2 * BS_NUM, E:2 * E].set(_scatter_t(bs_of_edge, BS_NUM))
    s_dst = s_dst.at[2 * BS_NUM:2 * BS_NUM + UE_NUM, 2 * E:3 * E].set(_scatter_t(ue_serv, UE_NUM))
    s_dst = s_dst.at[2 * BS_NUM + UE_NUM:NDST, 3 * E:E4].set(_scatter_t(ue_interf, UE_NUM))
    # beamforming-output gather (BS-major edge order) and per-BS pooling matrix
    p_bf = _onehot_rows(ue_serv, UE_NUM)                                         # [E, UE_NUM]
    q_pool = (bs_of_edge[:, None] == bs_of_edge[None, :]).astype(jnp.float32)    # [E, E]
    return {'g_src': g_src, 's_dst': s_dst, 'p_bf': p_bf, 'q_pool': q_pool}


def pack_params(params):
    mp, up = params['mlp_m'], params['mlp_u']
    w_pack = jnp.stack([mp['w1a'], mp['w1b'], mp['w2'],
                        up['w1a'], up['w1b'], up['w2'], params['bf_w']], axis=0)   # [7,32,32]
    b_pack = jnp.stack([mp['b1'], mp['b2'], up['b1'], up['b2'], params['bf_b']],
                       axis=0)                                                     # [5,1,32]
    return w_pack, b_pack


# ----------------------------------------------------------------------------
# Pure-JAX reference (for correctness check)
# ----------------------------------------------------------------------------
def _ref_mm(a, b):
    return jnp.dot(a, b, precision=jax.lax.Precision.HIGHEST)


def _ref_mlp2(x, w1, b1, w2, b2):
    return _leaky(_ref_mm(_leaky(_ref_mm(x, w1) + b1), w2) + b2)


def _ref_heconv(x_src, x_dst, src_idx, dst_idx, ea, mp, up):
    xj = x_src[src_idx]
    w1m = jnp.concatenate([mp['w1a'], mp['w1b']], axis=0)
    msg = _ref_mlp2(jnp.concatenate([xj, ea], axis=1), w1m, mp['b1'], mp['w2'], mp['b2'])
    aggr = jax.ops.segment_sum(msg, dst_idx, num_segments=x_dst.shape[0])
    w1u = jnp.concatenate([up['w1a'], up['w1b']], axis=0)
    return _ref_mlp2(jnp.concatenate([x_dst, aggr], axis=1), w1u, up['b1'], up['w2'], up['b2'])


def ref_forward(x_ue, x_bs, idx, ea, params):
    mp, up = params['mlp_m'], params['mlp_u']
    bs_e, ue_s, ue_i = idx['bs_of_edge'], idx['ue_serv'], idx['ue_interf']
    ue, bs = x_ue, x_bs
    for _ in range(NLAYER):
        new_bs = (_ref_heconv(ue, bs, ue_s, bs_e, ea['sv_u2b'], mp, up) +
                  _ref_heconv(ue, bs, ue_i, bs_e, ea['if_u2b'], mp, up))
        new_ue = (_ref_heconv(bs, ue, bs_e, ue_s, ea['sv_b2u'], mp, up) +
                  _ref_heconv(bs, ue, bs_e, ue_i, ea['if_b2u'], mp, up))
        ue, bs = new_ue, new_bs
    y = jnp.tanh(_ref_mm(ue[ue_s], params['bf_w']) + params['bf_b'])
    outs = []
    for i in range(BS_NUM):
        blk = y[i * UE_PER_BS:(i + 1) * UE_PER_BS]
        n = jnp.sqrt(jnp.sum(blk * blk))
        outs.append(jnp.where(n > 1.0, blk / n, blk))
    return outs


# ----------------------------------------------------------------------------
# Deterministic parameter construction
# ----------------------------------------------------------------------------
def init_linear(key, fan_in, fan_out):
    kw, kb = jax.random.split(key)
    bound = 1.0 / np.sqrt(fan_in)
    w = jax.random.uniform(kw, (fan_in, fan_out), jnp.float32, -bound, bound)
    b = jax.random.uniform(kb, (1, fan_out), jnp.float32, -bound, bound)
    return w, b


def init_mlp2(key, d_a, d_b, d_hid, d_out):
    k1, k2 = jax.random.split(key)
    w1, b1 = init_linear(k1, d_a + d_b, d_hid)
    w2, b2 = init_linear(k2, d_hid, d_out)
    return {'w1a': w1[:d_a], 'w1b': w1[d_a:], 'b1': b1, 'w2': w2, 'b2': b2}


if __name__ == "__main__":
    root = jax.random.PRNGKey(0)
    keys = jax.random.split(root, 10)

    # --- batched node features & edge attributes (BATCH independent layouts) ---
    x_ue = jax.random.normal(keys[0], (BATCH, UE_NUM, F), jnp.float32)
    x_bs = jax.random.normal(keys[1], (BATCH, BS_NUM, F), jnp.float32)
    x_nodes = jnp.concatenate([x_ue, x_bs], axis=1)          # [BATCH, NSRC, F]
    ea = {
        'sv_u2b': jax.random.normal(keys[2], (BATCH, E, F), jnp.float32),   # ('UE','service','BS')
        'if_u2b': jax.random.normal(keys[3], (BATCH, E, F), jnp.float32),   # ('UE','interf','BS')
        'sv_b2u': jax.random.normal(keys[4], (BATCH, E, F), jnp.float32),   # ('BS','service','UE')
        'if_b2u': jax.random.normal(keys[5], (BATCH, E, F), jnp.float32),   # ('BS','interf','UE')
    }
    # stacked edge attrs; row-block order must match g_src / s_dst block order
    ea_all = jnp.concatenate([ea['sv_u2b'], ea['if_u2b'], ea['sv_b2u'], ea['if_b2u']], axis=1)

    # --- topology: BS i serves UE 2i, 2i+1; interferes with UE 2i+2, 2i+3 ---
    bs_of_edge = jnp.repeat(jnp.arange(BS_NUM, dtype=jnp.int32), UE_PER_BS)   # [E]
    ue_serv = jnp.arange(UE_NUM, dtype=jnp.int32)                             # [E]
    ue_interf = (ue_serv + UE_PER_BS) % UE_NUM                                # [E]
    idx = {'bs_of_edge': bs_of_edge, 'ue_serv': ue_serv, 'ue_interf': ue_interf}
    topo = build_topology(bs_of_edge, ue_serv, ue_interf)

    # --- parameters (shapes from CGNN.__init__, shared across all layers) ---
    bf_w, bf_b = init_linear(keys[8], F, F)
    params = {
        'mlp_m': init_mlp2(keys[6], F, F, HID, HID),     # MLP([2*2*Nt, 32, 32])
        'mlp_u': init_mlp2(keys[7], F, HID, HID, F),     # MLP([32+2*Nt, 32, 2*Nt])
        'bf_w': bf_w, 'bf_b': bf_b,
    }
    w_pack, b_pack = pack_params(params)

    # --- run the fused Pallas kernel ---
    out = cgnn_forward(x_nodes, ea_all, topo, w_pack, b_pack)
    out = jax.block_until_ready(out)                     # [BATCH, BS_NUM, UE_PER_BS, F]

    # --- check every layout against the pure-JAX reference ---
    for b in range(BATCH):
        ea_b = {k: v[b] for k, v in ea.items()}
        ref = jnp.stack(ref_forward(x_ue[b], x_bs[b], idx, ea_b, params))   # [BS, UE_PER_BS, F]
        np.testing.assert_allclose(np.asarray(out[b]), np.asarray(ref),
                                   rtol=1e-3, atol=1e-3)

    print("KERNEL_OK")
</pallas_src>

<mosaic_0001>
module attributes {stable_mosaic.version = 11 : i64} {
  func.func @cgnn_kernel(%arg0: i32, %arg1: memref<1x48x32xf32, #tpu.memory_space<vmem>>, %arg2: memref<1x128x32xf32, #tpu.memory_space<vmem>>, %arg3: memref<128x48xf32, #tpu.memory_space<vmem>>, %arg4: memref<96x128xf32, #tpu.memory_space<vmem>>, %arg5: memref<32x32xf32, #tpu.memory_space<vmem>>, %arg6: memref<32x32xf32, #tpu.memory_space<vmem>>, %arg7: memref<7x32x32xf32, #tpu.memory_space<vmem>>, %arg8: memref<5x1x32xf32, #tpu.memory_space<vmem>>, %arg9: memref<1x32x32xf32, #tpu.memory_space<vmem>>) attributes {dimension_semantics = [#tpu.dimension_semantics<parallel>], iteration_bounds = array<i64: 4>, scalar_prefetch = 0 : i64, scratch_operands = 0 : i64, tpu.core_type = #tpu.core_type<tc>, window_params = [{transform_indices = @transform_0, window_bounds = array<i64: 1, 48, 32>}, {transform_indices = @transform_1, window_bounds = array<i64: 1, 128, 32>}, {pipeline_mode = #tpu.pipeline_mode<synchronous>, transform_indices = @transform_2, window_bounds = array<i64: 128, 48>}, {pipeline_mode = #tpu.pipeline_mode<synchronous>, transform_indices = @transform_3, window_bounds = array<i64: 96, 128>}, {pipeline_mode = #tpu.pipeline_mode<synchronous>, transform_indices = @transform_4, window_bounds = array<i64: 32, 32>}, {pipeline_mode = #tpu.pipeline_mode<synchronous>, transform_indices = @transform_5, window_bounds = array<i64: 32, 32>}, {pipeline_mode = #tpu.pipeline_mode<synchronous>, transform_indices = @transform_6, window_bounds = array<i64: 7, 32, 32>}, {pipeline_mode = #tpu.pipeline_mode<synchronous>, transform_indices = @transform_7, window_bounds = array<i64: 5, 1, 32>}, {transform_indices = @transform_8, window_bounds = array<i64: 1, 32, 32>}]} {
    %c0 = arith.constant 0 : index
    %c0_0 = arith.constant 0 : index
    %c0_1 = arith.constant 0 : index
    %0 = vector.load %arg7[%c0, %c0_0, %c0_1] : memref<7x32x32xf32, #tpu.memory_space<vmem>>, vector<1x32x32xf32>
    %1 = vector.shape_cast %0 : vector<1x32x32xf32> to vector<32x32xf32>
    %c1 = arith.constant 1 : index
    %c0_2 = arith.constant 0 : index
    %c0_3 = arith.constant 0 : index
    %2 = vector.load %arg7[%c1, %c0_2, %c0_3] : memref<7x32x32xf32, #tpu.memory_space<vmem>>, vector<1x32x32xf32>
    %3 = vector.shape_cast %2 : vector<1x32x32xf32> to vector<32x32xf32>
    %c2 = arith.constant 2 : index
    %c0_4 = arith.constant 0 : index
    %c0_5 = arith.constant 0 : index
    %4 = vector.load %arg7[%c2, %c0_4, %c0_5] : memref<7x32x32xf32, #tpu.memory_space<vmem>>, vector<1x32x32xf32>
    %5 = vector.shape_cast %4 : vector<1x32x32xf32> to vector<32x32xf32>
    %c3 = arith.constant 3 : index
    %c0_6 = arith.constant 0 : index
    %c0_7 = arith.constant 0 : index
    %6 = vector.load %arg7[%c3, %c0_6, %c0_7] : memref<7x32x32xf32, #tpu.memory_space<vmem>>, vector<1x32x32xf32>
    %7 = vector.shape_cast %6 : vector<1x32x32xf32> to vector<32x32xf32>
    %c4 = arith.constant 4 : index
    %c0_8 = arith.constant 0 : index
    %c0_9 = arith.constant 0 : index
    %8 = vector.load %arg7[%c4, %c0_8, %c0_9] : memref<7x32x32xf32, #tpu.memory_space<vmem>>, vector<1x32x32xf32>
    %9 = vector.shape_cast %8 : vector<1x32x32xf32> to vector<32x32xf32>
    %c5 = arith.constant 5 : index
    %c0_10 = arith.constant 0 : index
    %c0_11 = arith.constant 0 : index
    %10 = vector.load %arg7[%c5, %c0_10, %c0_11] : memref<7x32x32xf32, #tpu.memory_space<vmem>>, vector<1x32x32xf32>
    %11 = vector.shape_cast %10 : vector<1x32x32xf32> to vector<32x32xf32>
    %c6 = arith.constant 6 : index
    %c0_12 = arith.constant 0 : index
    %c0_13 = arith.constant 0 : index
    %12 = vector.load %arg7[%c6, %c0_12, %c0_13] : memref<7x32x32xf32, #tpu.memory_space<vmem>>, vector<1x32x32xf32>
    %13 = vector.shape_cast %12 : vector<1x32x32xf32> to vector<32x32xf32>
    %c0_14 = arith.constant 0 : index
    %c0_15 = arith.constant 0 : index
    %c0_16 = arith.constant 0 : index
    %14 = vector.load %arg8[%c0_14, %c0_15, %c0_16] : memref<5x1x32xf32, #tpu.memory_space<vmem>>, vector<1x1x32xf32>
    %15 = vector.shape_cast %14 : vector<1x1x32xf32> to vector<1x32xf32>
    %c1_17 = arith.constant 1 : index
    %c0_18 = arith.constant 0 : index
    %c0_19 = arith.constant 0 : index
    %16 = vector.load %arg8[%c1_17, %c0_18, %c0_19] : memref<5x1x32xf32, #tpu.memory_space<vmem>>, vector<1x1x32xf32>
    %17 = vector.shape_cast %16 : vector<1x1x32xf32> to vector<1x32xf32>
    %c2_20 = arith.constant 2 : index
    %c0_21 = arith.constant 0 : index
    %c0_22 = arith.constant 0 : index
    %18 = vector.load %arg8[%c2_20, %c0_21, %c0_22] : memref<5x1x32xf32, #tpu.memory_space<vmem>>, vector<1x1x32xf32>
    %19 = vector.shape_cast %18 : vector<1x1x32xf32> to vector<1x32xf32>
    %c3_23 = arith.constant 3 : index
    %c0_24 = arith.constant 0 : index
    %c0_25 = arith.constant 0 : index
    %20 = vector.load %arg8[%c3_23, %c0_24, %c0_25] : memref<5x1x32xf32, #tpu.memory_space<vmem>>, vector<1x1x32xf32>
    %21 = vector.shape_cast %20 : vector<1x1x32xf32> to vector<1x32xf32>
    %c4_26 = arith.constant 4 : index
    %c0_27 = arith.constant 0 : index
    %c0_28 = arith.constant 0 : index
    %22 = vector.load %arg8[%c4_26, %c0_27, %c0_28] : memref<5x1x32xf32, #tpu.memory_space<vmem>>, vector<1x1x32xf32>
    %23 = vector.shape_cast %22 : vector<1x1x32xf32> to vector<1x32xf32>
    %c0_29 = arith.constant 0 : index
    %c0_30 = arith.constant 0 : index
    %24 = vector.load %arg3[%c0_29, %c0_30] : memref<128x48xf32, #tpu.memory_space<vmem>>, vector<128x48xf32>
    %c0_31 = arith.constant 0 : index
    %c0_32 = arith.constant 0 : index
    %25 = vector.load %arg4[%c0_31, %c0_32] : memref<96x128xf32, #tpu.memory_space<vmem>>, vector<96x128xf32>
    %c0_33 = arith.constant 0 : index
    %c0_34 = arith.constant 0 : index
    %c0_35 = arith.constant 0 : index
    %26 = vector.load %arg1[%c0_33, %c0_34, %c0_35] : memref<1x48x32xf32, #tpu.memory_space<vmem>>, vector<1x48x32xf32>
    %27 = vector.shape_cast %26 : vector<1x48x32xf32> to vector<48x32xf32>
    %c0_36 = arith.constant 0 : index
    %c0_37 = arith.constant 0 : index
    %c0_38 = arith.constant 0 : index
    %28 = vector.load %arg2[%c0_36, %c0_37, %c0_38] : memref<1x128x32xf32, #tpu.memory_space<vmem>>, vector<1x128x32xf32>
    %29 = vector.shape_cast %28 : vector<1x128x32xf32> to vector<128x32xf32>
    %cst = arith.constant dense<0.000000e+00> : vector<128x32xf32>
    %30 = tpu.matmul %29, %3, %cst {dimension_numbers = #tpu.dot_dimension_numbers<[1], [0], [0], [1], [0, 0, 1, 1], [], []>} : vector<128x32xf32>, vector<32x32xf32>, vector<128x32xf32> -> vector<128x32xf32>
    %31 = vector.broadcast %15 : vector<1x32xf32> to vector<128x32xf32>
    %32 = arith.addf %30, %31 : vector<128x32xf32>
    %cst_39 = arith.constant dense<0.000000e+00> : vector<48x32xf32>
    %33 = tpu.matmul %27, %1, %cst_39 {dimension_numbers = #tpu.dot_dimension_numbers<[1], [0], [0], [1], [0, 0, 1, 1], [], []>} : vector<48x32xf32>, vector<32x32xf32>, vector<48x32xf32> -> vector<48x32xf32>
    %cst_40 = arith.constant dense<0.000000e+00> : vector<128x32xf32>
    %34 = tpu.matmul %24, %33, %cst_40 {dimension_numbers = #tpu.dot_dimension_numbers<[1], [0], [0], [1], [0, 0, 1, 1], [], []>} : vector<128x48xf32>, vector<48x32xf32>, vector<128x32xf32> -> vector<128x32xf32>
    %35 = arith.addf %34, %32 : vector<128x32xf32>
    %cst_41 = arith.constant 0.00999999977 : f32
    %36 = vector.broadcast %cst_41 : f32 to vector<128x32xf32>
    %37 = arith.mulf %36, %35 : vector<128x32xf32>
    %38 = arith.maximumf %35, %37 : vector<128x32xf32>
    %cst_42 = arith.constant dense<0.000000e+00> : vector<128x32xf32>
    %39 = tpu.matmul %38, %5, %cst_42 {dimension_numbers = #tpu.dot_dimension_numbers<[1], [0], [0], [1], [0, 0, 1, 1], [], []>} : vector<128x32xf32>, vector<32x32xf32>, vector<128x32xf32> -> vector<128x32xf32>
    %40 = vector.broadcast %17 : vector<1x32xf32> to vector<128x32xf32>
    %41 = arith.addf %39, %40 : vector<128x32xf32>
    %cst_43 = arith.constant 0.00999999977 : f32
    %42 = vector.broadcast %cst_43 : f32 to vector<128x32xf32>
    %43 = arith.mulf %42, %41 : vector<128x32xf32>
    %44 = arith.maximumf %41, %43 : vector<128x32xf32>
    %cst_44 = arith.constant dense<0.000000e+00> : vector<96x32xf32>
    %45 = tpu.matmul %25, %44, %cst_44 {dimension_numbers = #tpu.dot_dimension_numbers<[1], [0], [0], [1], [0, 0, 1, 1], [], []>} : vector<96x128xf32>, vector<128x32xf32>, vector<96x32xf32> -> vector<96x32xf32>
    %46 = vector.extract_strided_slice %27 {offsets = [0, 0], sizes = [32, 32], strides = [1, 1]} : vector<48x32xf32> to vector<32x32xf32>
    %47 = vector.extract_strided_slice %27 {offsets = [32, 0], sizes = [16, 32], strides = [1, 1]} : vector<48x32xf32> to vector<16x32xf32>
    %cst_45 = arith.constant dense<0.000000e+00> : vector<16x32xf32>
    %48 = tpu.matmul %47, %7, %cst_45 {dimension_numbers = #tpu.dot_dimension_numbers<[1], [0], [0], [1], [0, 0, 1, 1], [], []>} : vector<16x32xf32>, vector<32x32xf32>, vector<16x32xf32> -> vector<16x32xf32>
    %cst_46 = arith.constant dense<0.000000e+00> : vector<32x32xf32>
    %49 = tpu.matmul %46, %7, %cst_46 {dimension_numbers = #tpu.dot_dimension_numbers<[1], [0], [0], [1], [0, 0, 1, 1], [], []>} : vector<32x32xf32>, vector<32x32xf32>, vector<32x32xf32> -> vector<32x32xf32>
    %50 = tpu.concatenate %48, %48, %49, %49 in 0 : vector<16x32xf32>, vector<16x32xf32>, vector<32x32xf32>, vector<32x32xf32> -> vector<96x32xf32>
    %cst_47 = arith.constant dense<0.000000e+00> : vector<96x32xf32>
    %51 = tpu.matmul %45, %9, %cst_47 {dimension_numbers = #tpu.dot_dimension_numbers<[1], [0], [0], [1], [0, 0, 1, 1], [], []>} : vector<96x32xf32>, vector<32x32xf32>, vector<96x32xf32> -> vector<96x32xf32>
    %52 = arith.addf %50, %51 : vector<96x32xf32>
    %53 = vector.broadcast %19 : vector<1x32xf32> to vector<96x32xf32>
    %54 = arith.addf %52, %53 : vector<96x32xf32>
    %cst_48 = arith.constant 0.00999999977 : f32
    %55 = vector.broadcast %cst_48 : f32 to vector<96x32xf32>
    %56 = arith.mulf %55, %54 : vector<96x32xf32>
    %57 = arith.maximumf %54, %56 : vector<96x32xf32>
    %cst_49 = arith.constant dense<0.000000e+00> : vector<96x32xf32>
    %58 = tpu.matmul %57, %11, %cst_49 {dimension_numbers = #tpu.dot_dimension_numbers<[1], [0], [0], [1], [0, 0, 1, 1], [], []>} : vector<96x32xf32>, vector<32x32xf32>, vector<96x32xf32> -> vector<96x32xf32>
    %59 = vector.broadcast %21 : vector<1x32xf32> to vector<96x32xf32>
    %60 = arith.addf %58, %59 : vector<96x32xf32>
    %cst_50 = arith.constant 0.00999999977 : f32
    %61 = vector.broadcast %cst_50 : f32 to vector<96x32xf32>
    %62 = arith.mulf %61, %60 : vector<96x32xf32>
    %63 = arith.maximumf %60, %62 : vector<96x32xf32>
    %64 = vector.extract_strided_slice %63 {offsets = [0, 0], sizes = [16, 32], strides = [1, 1]} : vector<96x32xf32> to vector<16x32xf32>
    %65 = vector.extract_strided_slice %63 {offsets = [16, 0], sizes = [16, 32], strides = [1, 1]} : vector<96x32xf32> to vector<16x32xf32>
    %66 = arith.addf %64, %65 : vector<16x32xf32>
    %67 = vector.extract_strided_slice %63 {offsets = [32, 0], sizes = [32, 32], strides = [1, 1]} : vector<96x32xf32> to vector<32x32xf32>
    %68 = vector.extract_strided_slice %63 {offsets = [64, 0], sizes = [32, 32], strides = [1, 1]} : vector<96x32xf32> to vector<32x32xf32>
    %69 = arith.addf %67, %68 : vector<32x32xf32>
    %70 = tpu.concatenate %69, %66 in 0 : vector<32x32xf32>, vector<16x32xf32> -> vector<48x32xf32>
    %cst_51 = arith.constant dense<0.000000e+00> : vector<48x32xf32>
    %71 = tpu.matmul %70, %1, %cst_51 {dimension_numbers = #tpu.dot_dimension_numbers<[1], [0], [0], [1], [0, 0, 1, 1], [], []>} : vector<48x32xf32>, vector<32x32xf32>, vector<48x32xf32> -> vector<48x32xf32>
    %cst_52 = arith.constant dense<0.000000e+00> : vector<128x32xf32>
    %72 = tpu.matmul %24, %71, %cst_52 {dimension_numbers = #tpu.dot_dimension_numbers<[1], [0], [0], [1], [0, 0, 1, 1], [], []>} : vector<128x48xf32>, vector<48x32xf32>, vector<128x32xf32> -> vector<128x32xf32>
    %73 = arith.addf %72, %32 : vector<128x32xf32>
    %cst_53 = arith.constant 0.00999999977 : f32
    %74 = vector.broadcast %cst_53 : f32 to vector<128x32xf32>
    %75 = arith.mulf %74, %73 : vector<128x32xf32>
    %76 = arith.maximumf %73, %75 : vector<128x32xf32>
    %cst_54 = arith.constant dense<0.000000e+00> : vector<128x32xf32>
    %77 = tpu.matmul %76, %5, %cst_54 {dimension_numbers = #tpu.dot_dimension_numbers<[1], [0], [0], [1], [0, 0, 1, 1], [], []>} : vector<128x32xf32>, vector<32x32xf32>, vector<128x32xf32> -> vector<128x32xf32>
    %78 = vector.broadcast %17 : vector<1x32xf32> to vector<128x32xf32>
    %79 = arith.addf %77, %78 : vector<128x32xf32>
    %cst_55 = arith.constant 0.00999999977 : f32
    %80 = vector.broadcast %cst_55 : f32 to vector<128x32xf32>
    %81 = arith.mulf %80, %79 : vector<128x32xf32>
    %82 = arith.maximumf %79, %81 : vector<128x32xf32>
    %cst_56 = arith.constant dense<0.000000e+00> : vector<96x32xf32>
    %83 = tpu.matmul %25, %82, %cst_56 {dimension_numbers = #tpu.dot_dimension_numbers<[1], [0], [0], [1], [0, 0, 1, 1], [], []>} : vector<96x128xf32>, vector<128x32xf32>, vector<96x32xf32> -> vector<96x32xf32>
    %84 = vector.extract_strided_slice %70 {offsets = [0, 0], sizes = [32, 32], strides = [1, 1]} : vector<48x32xf32> to vector<32x32xf32>
    %85 = vector.extract_strided_slice %70 {offsets = [32, 0], sizes = [16, 32], strides = [1, 1]} : vector<48x32xf32> to vector<16x32xf32>
    %cst_57 = arith.constant dense<0.000000e+00> : vector<16x32xf32>
    %86 = tpu.matmul %85, %7, %cst_57 {dimension_numbers = #tpu.dot_dimension_numbers<[1], [0], [0], [1], [0, 0, 1, 1], [], []>} : vector<16x32xf32>, vector<32x32xf32>, vector<16x32xf32> -> vector<16x32xf32>
    %cst_58 = arith.constant dense<0.000000e+00> : vector<32x32xf32>
    %87 = tpu.matmul %84, %7, %cst_58 {dimension_numbers = #tpu.dot_dimension_numbers<[1], [0], [0], [1], [0, 0, 1, 1], [], []>} : vector<32x32xf32>, vector<32x32xf32>, vector<32x32xf32> -> vector<32x32xf32>
    %88 = tpu.concatenate %86, %86, %87, %87 in 0 : vector<16x32xf32>, vector<16x32xf32>, vector<32x32xf32>, vector<32x32xf32> -> vector<96x32xf32>
    %cst_59 = arith.constant dense<0.000000e+00> : vector<96x32xf32>
    %89 = tpu.matmul %83, %9, %cst_59 {dimension_numbers = #tpu.dot_dimension_numbers<[1], [0], [0], [1], [0, 0, 1, 1], [], []>} : vector<96x32xf32>, vector<32x32xf32>, vector<96x32xf32> -> vector<96x32xf32>
    %90 = arith.addf %88, %89 : vector<96x32xf32>
    %91 = vector.broadcast %19 : vector<1x32xf32> to vector<96x32xf32>
    %92 = arith.addf %90, %91 : vector<96x32xf32>
    %cst_60 = arith.constant 0.00999999977 : f32
    %93 = vector.broadcast %cst_60 : f32 to vector<96x32xf32>
    %94 = arith.mulf %93, %92 : vector<96x32xf32>
    %95 = arith.maximumf %92, %94 : vector<96x32xf32>
    %cst_61 = arith.constant dense<0.000000e+00> : vector<96x32xf32>
    %96 = tpu.matmul %95, %11, %cst_61 {dimension_numbers = #tpu.dot_dimension_numbers<[1], [0], [0], [1], [0, 0, 1, 1], [], []>} : vector<96x32xf32>, vector<32x32xf32>, vector<96x32xf32> -> vector<96x32xf32>
    %97 = vector.broadcast %21 : vector<1x32xf32> to vector<96x32xf32>
    %98 = arith.addf %96, %97 : vector<96x32xf32>
    %cst_62 = arith.constant 0.00999999977 : f32
    %99 = vector.broadcast %cst_62 : f32 to vector<96x32xf32>
    %100 = arith.mulf %99, %98 : vector<96x32xf32>
    %101 = arith.maximumf %98, %100 : vector<96x32xf32>
    %102 = vector.extract_strided_slice %101 {offsets = [0, 0], sizes = [16, 32], strides = [1, 1]} : vector<96x32xf32> to vector<16x32xf32>
    %103 = vector.extract_strided_slice %101 {offsets = [16, 0], sizes = [16, 32], strides = [1, 1]} : vector<96x32xf32> to vector<16x32xf32>
    %104 = arith.addf %102, %103 : vector<16x32xf32>
    %105 = vector.extract_strided_slice %101 {offsets = [32, 0], sizes = [32, 32], strides = [1, 1]} : vector<96x32xf32> to vector<32x32xf32>
    %106 = vector.extract_strided_slice %101 {offsets = [64, 0], sizes = [32, 32], strides = [1, 1]} : vector<96x32xf32> to vector<32x32xf32>
    %107 = arith.addf %105, %106 : vector<32x32xf32>
    %108 = tpu.concatenate %107, %104 in 0 : vector<32x32xf32>, vector<16x32xf32> -> vector<48x32xf32>
    %cst_63 = arith.constant dense<0.000000e+00> : vector<48x32xf32>
    %109 = tpu.matmul %108, %1, %cst_63 {dimension_numbers = #tpu.dot_dimension_numbers<[1], [0], [0], [1], [0, 0, 1, 1], [], []>} : vector<48x32xf32>, vector<32x32xf32>, vector<48x32xf32> -> vector<48x32xf32>
    %cst_64 = arith.constant dense<0.000000e+00> : vector<128x32xf32>
    %110 = tpu.matmul %24, %109, %cst_64 {dimension_numbers = #tpu.dot_dimension_numbers<[1], [0], [0], [1], [0, 0, 1, 1], [], []>} : vector<128x48xf32>, vector<48x32xf32>, vector<128x32xf32> -> vector<128x32xf32>
    %111 = arith.addf %110, %32 : vector<128x32xf32>
    %cst_65 = arith.constant 0.00999999977 : f32
    %112 = vector.broadcast %cst_65 : f32 to vector<128x32xf32>
    %113 = arith.mulf %112, %111 : vector<128x32xf32>
    %114 = arith.maximumf %111, %113 : vector<128x32xf32>
    %cst_66 = arith.constant dense<0.000000e+00> : vector<128x32xf32>
    %115 = tpu.matmul %114, %5, %cst_66 {dimension_numbers = #tpu.dot_dimension_numbers<[1], [0], [0], [1], [0, 0, 1, 1], [], []>} : vector<128x32xf32>, vector<32x32xf32>, vector<128x32xf32> -> vector<128x32xf32>
    %116 = vector.broadcast %17 : vector<1x32xf32> to vector<128x32xf32>
    %117 = arith.addf %115, %116 : vector<128x32xf32>
    %cst_67 = arith.constant 0.00999999977 : f32
    %118 = vector.broadcast %cst_67 : f32 to vector<128x32xf32>
    %119 = arith.mulf %118, %117 : vector<128x32xf32>
    %120 = arith.maximumf %117, %119 : vector<128x32xf32>
    %cst_68 = arith.constant dense<0.000000e+00> : vector<96x32xf32>
    %121 = tpu.matmul %25, %120, %cst_68 {dimension_numbers = #tpu.dot_dimension_numbers<[1], [0], [0], [1], [0, 0, 1, 1], [], []>} : vector<96x128xf32>, vector<128x32xf32>, vector<96x32xf32> -> vector<96x32xf32>
    %122 = vector.extract_strided_slice %108 {offsets = [0, 0], sizes = [32, 32], strides = [1, 1]} : vector<48x32xf32> to vector<32x32xf32>
    %123 = vector.extract_strided_slice %108 {offsets = [32, 0], sizes = [16, 32], strides = [1, 1]} : vector<48x32xf32> to vector<16x32xf32>
    %cst_69 = arith.constant dense<0.000000e+00> : vector<16x32xf32>
    %124 = tpu.matmul %123, %7, %cst_69 {dimension_numbers = #tpu.dot_dimension_numbers<[1], [0], [0], [1], [0, 0, 1, 1], [], []>} : vector<16x32xf32>, vector<32x32xf32>, vector<16x32xf32> -> vector<16x32xf32>
    %cst_70 = arith.constant dense<0.000000e+00> : vector<32x32xf32>
    %125 = tpu.matmul %122, %7, %cst_70 {dimension_numbers = #tpu.dot_dimension_numbers<[1], [0], [0], [1], [0, 0, 1, 1], [], []>} : vector<32x32xf32>, vector<32x32xf32>, vector<32x32xf32> -> vector<32x32xf32>
    %126 = tpu.concatenate %124, %124, %125, %125 in 0 : vector<16x32xf32>, vector<16x32xf32>, vector<32x32xf32>, vector<32x32xf32> -> vector<96x32xf32>
    %cst_71 = arith.constant dense<0.000000e+00> : vector<96x32xf32>
    %127 = tpu.matmul %121, %9, %cst_71 {dimension_numbers = #tpu.dot_dimension_numbers<[1], [0], [0], [1], [0, 0, 1, 1], [], []>} : vector<96x32xf32>, vector<32x32xf32>, vector<96x32xf32> -> vector<96x32xf32>
    %128 = arith.addf %126, %127 : vector<96x32xf32>
    %129 = vector.broadcast %19 : vector<1x32xf32> to vector<96x32xf32>
    %130 = arith.addf %128, %129 : vector<96x32xf32>
    %cst_72 = arith.constant 0.00999999977 : f32
    %131 = vector.broadcast %cst_72 : f32 to vector<96x32xf32>
    %132 = arith.mulf %131, %130 : vector<96x32xf32>
    %133 = arith.maximumf %130, %132 : vector<96x32xf32>
    %cst_73 = arith.constant dense<0.000000e+00> : vector<96x32xf32>
    %134 = tpu.matmul %133, %11, %cst_73 {dimension_numbers = #tpu.dot_dimension_numbers<[1], [0], [0], [1], [0, 0, 1, 1], [], []>} : vector<96x32xf32>, vector<32x32xf32>, vector<96x32xf32> -> vector<96x32xf32>
    %135 = vector.broadcast %21 : vector<1x32xf32> to vector<96x32xf32>
    %136 = arith.addf %134, %135 : vector<96x32xf32>
    %cst_74 = arith.constant 0.00999999977 : f32
    %137 = vector.broadcast %cst_74 : f32 to vector<96x32xf32>
    %138 = arith.mulf %137, %136 : vector<96x32xf32>
    %139 = arith.maximumf %136, %138 : vector<96x32xf32>
    %140 = vector.extract_strided_slice %139 {offsets = [0, 0], sizes = [16, 32], strides = [1, 1]} : vector<96x32xf32> to vector<16x32xf32>
    %141 = vector.extract_strided_slice %139 {offsets = [16, 0], sizes = [16, 32], strides = [1, 1]} : vector<96x32xf32> to vector<16x32xf32>
    %142 = arith.addf %140, %141 : vector<16x32xf32>
    %143 = vector.extract_strided_slice %139 {offsets = [32, 0], sizes = [32, 32], strides = [1, 1]} : vector<96x32xf32> to vector<32x32xf32>
    %144 = vector.extract_strided_slice %139 {offsets = [64, 0], sizes = [32, 32], strides = [1, 1]} : vector<96x32xf32> to vector<32x32xf32>
    %145 = arith.addf %143, %144 : vector<32x32xf32>
    %146 = tpu.concatenate %145, %142 in 0 : vector<32x32xf32>, vector<16x32xf32> -> vector<48x32xf32>
    %147 = vector.extract_strided_slice %146 {offsets = [0, 0], sizes = [32, 32], strides = [1, 1]} : vector<48x32xf32> to vector<32x32xf32>
    %c0_75 = arith.constant 0 : index
    %c0_76 = arith.constant 0 : index
    %148 = vector.load %arg5[%c0_75, %c0_76] : memref<32x32xf32, #tpu.memory_space<vmem>>, vector<32x32xf32>
    %cst_77 = arith.constant dense<0.000000e+00> : vector<32x32xf32>
    %149 = tpu.matmul %148, %147, %cst_77 {dimension_numbers = #tpu.dot_dimension_numbers<[1], [0], [0], [1], [0, 0, 1, 1], [], []>} : vector<32x32xf32>, vector<32x32xf32>, vector<32x32xf32> -> vector<32x32xf32>
    %cst_78 = arith.constant dense<0.000000e+00> : vector<32x32xf32>
    %150 = tpu.matmul %149, %13, %cst_78 {dimension_numbers = #tpu.dot_dimension_numbers<[1], [0], [0], [1], [0, 0, 1, 1], [], []>} : vector<32x32xf32>, vector<32x32xf32>, vector<32x32xf32> -> vector<32x32xf32>
    %151 = vector.broadcast %23 : vector<1x32xf32> to vector<32x32xf32>
    %152 = arith.addf %150, %151 : vector<32x32xf32>
    %153 = math.tanh %152 : vector<32x32xf32>
    %c0_79 = arith.constant 0 : index
    %c0_80 = arith.constant 0 : index
    %154 = vector.load %arg6[%c0_79, %c0_80] : memref<32x32xf32, #tpu.memory_space<vmem>>, vector<32x32xf32>
    %155 = arith.mulf %153, %153 : vector<32x32xf32>
    %cst_81 = arith.constant dense<0.000000e+00> : vector<32x32xf32>
    %156 = tpu.matmul %154, %155, %cst_81 {dimension_numbers = #tpu.dot_dimension_numbers<[1], [0], [0], [1], [0, 0, 1, 1], [], []>} : vector<32x32xf32>, vector<32x32xf32>, vector<32x32xf32> -> vector<32x32xf32>
    %cst_82 = arith.constant dense<0.000000e+00> : vector<32xf32>
    %157 = vector.multi_reduction <add>, %156, %cst_82 [1] : vector<32x32xf32> to vector<32xf32>
    %158 = vector.shape_cast %157 : vector<32xf32> to vector<32x1xf32>
    %cst_83 = arith.constant 1.000000e+00 : f32
    %159 = vector.broadcast %cst_83 : f32 to vector<32x1xf32>
    %160 = arith.maximumf %158, %159 : vector<32x1xf32>
    %161 = math.rsqrt %160 : vector<32x1xf32>
    %162 = vector.broadcast %161 : vector<32x1xf32> to vector<32x32xf32>
    %163 = arith.mulf %153, %162 : vector<32x32xf32>
    %c0_84 = arith.constant 0 : index
    %c0_85 = arith.constant 0 : index
    %c0_86 = arith.constant 0 : index
    %164 = vector.load %arg9[%c0_84, %c0_85, %c0_86] : memref<1x32x32xf32, #tpu.memory_space<vmem>>, vector<1x32x32xf32>
    %165 = vector.shape_cast %164 : vector<1x32x32xf32> to vector<32x32xf32>
    %166 = vector.shape_cast %163 : vector<32x32xf32> to vector<1x32x32xf32>
    tpu.vector_store %arg9[%c0_84, %c0_85, %c0_86], %166 {strides = array<i32>} : memref<1x32x32xf32, #tpu.memory_space<vmem>>, vector<1x32x32xf32>,
    return
  }
  func.func @transform_0(%arg0: i32) -> (i32, i32, i32) {
    %c0_i32 = arith.constant 0 : i32
    %c0_i32_0 = arith.constant 0 : i32
    %c0_i32_1 = arith.constant 0 : i32
    return %arg0, %c0_i32, %c0_i32_0 : i32, i32, i32
  }
  func.func @transform_1(%arg0: i32) -> (i32, i32, i32) {
    %c0_i32 = arith.constant 0 : i32
    %c0_i32_0 = arith.constant 0 : i32
    %c0_i32_1 = arith.constant 0 : i32
    return %arg0, %c0_i32, %c0_i32_0 : i32, i32, i32
  }
  func.func @transform_2(%arg0: i32) -> (i32, i32) {
    %c0_i32 = arith.constant 0 : i32
    %c0_i32_0 = arith.constant 0 : i32
    %c0_i32_1 = arith.constant 0 : i32
    return %c0_i32, %c0_i32_0 : i32, i32
  }
  func.func @transform_3(%arg0: i32) -> (i32, i32) {
    %c0_i32 = arith.constant 0 : i32
    %c0_i32_0 = arith.constant 0 : i32
    %c0_i32_1 = arith.constant 0 : i32
    return %c0_i32, %c0_i32_0 : i32, i32
  }
  func.func @transform_4(%arg0: i32) -> (i32, i32) {
    %c0_i32 = arith.constant 0 : i32
    %c0_i32_0 = arith.constant 0 : i32
    %c0_i32_1 = arith.constant 0 : i32
    return %c0_i32, %c0_i32_0 : i32, i32
  }
  func.func @transform_5(%arg0: i32) -> (i32, i32) {
    %c0_i32 = arith.constant 0 : i32
    %c0_i32_0 = arith.constant 0 : i32
    %c0_i32_1 = arith.constant 0 : i32
    return %c0_i32, %c0_i32_0 : i32, i32
  }
  func.func @transform_6(%arg0: i32) -> (i32, i32, i32) {
    %c0_i32 = arith.constant 0 : i32
    %c0_i32_0 = arith.constant 0 : i32
    %c0_i32_1 = arith.constant 0 : i32
    %c0_i32_2 = arith.constant 0 : i32
    return %c0_i32, %c0_i32_0, %c0_i32_1 : i32, i32, i32
  }
  func.func @transform_7(%arg0: i32) -> (i32, i32, i32) {
    %c0_i32 = arith.constant 0 : i32
    %c0_i32_0 = arith.constant 0 : i32
    %c0_i32_1 = arith.constant 0 : i32
    %c0_i32_2 = arith.constant 0 : i32
    return %c0_i32, %c0_i32_0, %c0_i32_1 : i32, i32, i32
  }
  func.func @transform_8(%arg0: i32) -> (i32, i32, i32) {
    %c0_i32 = arith.constant 0 : i32
    %c0_i32_0 = arith.constant 0 : i32
    %c0_i32_1 = arith.constant 0 : i32
    return %arg0, %c0_i32, %c0_i32_0 : i32, i32, i32
  }
}

</mosaic_0001>

<llo_original>
// kernel: tpu_custom_call.1
$region0: #{tpu_custom_call.1}
  #allocation0 [shape = 'u32[]', space=smem, size = 0x4, offset = 0x4, fixed_abs, tag = 'smem constant byte address 0x4 - core index']
  #allocation1 [shape = 'u32[72,128]{1,0:T(1,128)}', space=vmem, size = 0x9000, scoped, tag = 'internal scratch']
  %s0 = inlined_call_operand.vmem [shape: f32[4,48,32], index: 0, kind: input, shape index: {}]
  %s1 = inlined_call_operand.vmem [shape: f32[4,128,32], index: 1, kind: input, shape index: {}]
  %s2 = inlined_call_operand.vmem [shape: f32[128,48], index: 2, kind: input, shape index: {}]
  %s3 = inlined_call_operand.vmem [shape: f32[96,128], index: 3, kind: input, shape index: {}]
  %s4 = inlined_call_operand.vmem [shape: f32[32,32], index: 4, kind: input, shape index: {}]
  %s5 = inlined_call_operand.vmem [shape: f32[32,32], index: 5, kind: input, shape index: {}]
  %s6 = inlined_call_operand.vmem [shape: f32[7,32,32], index: 6, kind: input, shape index: {}]
  %s7 = inlined_call_operand.vmem [shape: f32[5,1,32], index: 7, kind: input, shape index: {}]
  %s8 = inlined_call_operand.hbm [shape: f32[4,32,32], index: 8, kind: output, shape index: {}]
  %s9 = sld [smem:[#allocation0]]
  $region65: #{tpu_custom_call.1} parent=0
    _
  %s11 = ssub.s32 1, %s9
  %s12 = scalar_select 0, %s11, %s9
  $region1: #{tpu_custom_call.1} parent=0
    #allocation2 [shape = 'u8[32768]{0}', space=vmem, size = 0x8000, scoped, tag = 'output window, operand 0']
    #allocation3 [shape = 's32[2]{0}', space=sflag, size = 0x8, scoped, tag = 'scoped memory for tpu_custom_call.1']
    %13 = vsyncpa [#allocation3], 0
    %s14 = scalar_lea.sflag [#allocation3], 1
    %15 = vsyncpa %s14, 0
    loop: start=0, step=1, limit=6
    $region2: #{tpu_custom_call.1} parent=1 // loop_pre_header
      _
    $region3: #{tpu_custom_call.1} parent=1 // loop_header
      %s17 = sphi 0, %s21
      %p18 = scmp.ge.s32.totalorder %s17, 6
      %s27 = sphi 0, %s29
      %s30 = sphi 0, %s27
      %s31 = sphi 0, %s30
      %s47 = sphi 0, %s31
      %s53 = sphi 0, %s55
      %s56 = sphi 0, %s53
      %s57 = sphi 0, %s56
      %s73 = sphi 0, %s57
      %s77 = sphi 0, %s77
      %s79 = sphi 0, %s77
      %s80 = sphi 0, %s79
      %s94 = sphi 0, %s80
      %s98 = sphi 0, %s98
      %s100 = sphi 0, %s98
      %s101 = sphi 0, %s100
      %s115 = sphi 0, %s101
      %s119 = sphi 0, %s119
      %s121 = sphi 0, %s119
      %s122 = sphi 0, %s121
      %s136 = sphi 0, %s122
      %s140 = sphi 0, %s140
      %s142 = sphi 0, %s140
      %s143 = sphi 0, %s142
      %s157 = sphi 0, %s143
      %s161 = sphi 0, %s161
      %s163 = sphi 0, %s161
      %s164 = sphi 0, %s163
      %s178 = sphi 0, %s164
      %s182 = sphi 0, %s182
      %s184 = sphi 0, %s182
      %s185 = sphi 0, %s184
      %s199 = sphi 0, %s185
      %s205 = sphi 0, %s207
      %s208 = sphi 0, %s205
      %s209 = sphi 0, %s208
      %s225 = sphi 0, %s209
    $region4: #{tpu_custom_call.1} parent=1 // loop_header_branch
      %20 = sbr.rel (%p18) target = $region8
    $region5: #{tpu_custom_call.1} parent=1 // loop_body
      %s22 = ssub.s32 %s17, 1
      %s23 = ssub.s32 %s17, 2
      %s24 = sadd.s32 %s17, 1
      %s25 = ssub.s32 %s17, %s24
      %p26 = scmp.eq.s32.totalorder %s25, 0
      %s28 = sadd.s32 %s27, 1
      %s29 = scalar_select %p26, %s27, %s28
      %p32 = pneg %p26
      %p33 = scmp.eq.s32.totalorder %s17, 3
      %p34 = por %p32, %p33
      %p35 = scmp.ne.s32.totalorder %s27, %s30
      %p36 = scmp.eq.s32.totalorder %s17, 0
      %p37 = por %p35, %p36
      %p38 = scmp.ne.s32.totalorder %s27, %s30
      %p39 = scmp.eq.s32.totalorder %s22, 3
      %p40 = por %p38, %p39
      %p41 = scmp.ne.s32.totalorder %s30, %s31
      %p42 = scmp.eq.s32.totalorder %s22, 0
      %p43 = por %p41, %p42
      %p44 = scmp.ne.s32.totalorder %s30, %s31
      %p45 = scmp.eq.s32.totalorder %s23, 3
      %p46 = por %p44, %p45
      %p48 = scmp.ne.s32.totalorder %s31, %s47
      %p49 = scmp.eq.s32.totalorder %s23, 0
      %p50 = por %p48, %p49
      %s51 = ssub.s32 %s17, %s24
      %p52 = scmp.eq.s32.totalorder %s51, 0
      %s54 = sadd.s32 %s53, 1
      %s55 = scalar_select %p52, %s53, %s54
      %p58 = pneg %p52
      %p59 = scmp.eq.s32.totalorder %s17, 3
      %p60 = por %p58, %p59
      %p61 = scmp.ne.s32.totalorder %s53, %s56
      %p62 = scmp.eq.s32.totalorder %s17, 0
      %p63 = por %p61, %p62
      %p64 = scmp.ne.s32.totalorder %s53, %s56
      %p65 = scmp.eq.s32.totalorder %s22, 3
      %p66 = por %p64, %p65
      %p67 = scmp.ne.s32.totalorder %s56, %s57
      %p68 = scmp.eq.s32.totalorder %s22, 0
      %p69 = por %p67, %p68
      %p70 = scmp.ne.s32.totalorder %s56, %s57
      %p71 = scmp.eq.s32.totalorder %s23, 3
      %p72 = por %p70, %p71
      %p74 = scmp.ne.s32.totalorder %s57, %s73
      %p75 = scmp.eq.s32.totalorder %s23, 0
      %p76 = por %p74, %p75
      %s78 = sadd.s32 %s77, 1
      %p81 = scmp.eq.s32.totalorder %s17, 3
      %p82 = scmp.ne.s32.totalorder %s77, %s79
      %p83 = scmp.eq.s32.totalorder %s17, 0
      %p84 = por %p82, %p83
      %p85 = scmp.ne.s32.totalorder %s77, %s79
      %p86 = scmp.eq.s32.totalorder %s22, 3
      %p87 = por %p85, %p86
      %p88 = scmp.ne.s32.totalorder %s79, %s80
      %p89 = scmp.eq.s32.totalorder %s22, 0
      %p90 = por %p88, %p89
      %p91 = scmp.ne.s32.totalorder %s79, %s80
      %p92 = scmp.eq.s32.totalorder %s23, 3
      %p93 = por %p91, %p92
      %p95 = scmp.ne.s32.totalorder %s80, %s94
      %p96 = scmp.eq.s32.totalorder %s23, 0
      %p97 = por %p95, %p96
      %s99 = sadd.s32 %s98, 1
      %p102 = scmp.eq.s32.totalorder %s17, 3
      %p103 = scmp.ne.s32.totalorder %s98, %s100
      %p104 = scmp.eq.s32.totalorder %s17, 0
      %p105 = por %p103, %p104
      %p106 = scmp.ne.s32.totalorder %s98, %s100
      %p107 = scmp.eq.s32.totalorder %s22, 3
      %p108 = por %p106, %p107
      %p109 = scmp.ne.s32.totalorder %s100, %s101
      %p110 = scmp.eq.s32.totalorder %s22, 0
      %p111 = por %p109, %p110
      %p112 = scmp.ne.s32.totalorder %s100, %s101
      %p113 = scmp.eq.s32.totalorder %s23, 3
      %p114 = por %p112, %p113
      %p116 = scmp.ne.s32.totalorder %s101, %s115
      %p117 = scmp.eq.s32.totalorder %s23, 0
      %p118 = por %p116, %p117
      %s120 = sadd.s32 %s119, 1
      %p123 = scmp.eq.s32.totalorder %s17, 3
      %p124 = scmp.ne.s32.totalorder %s119, %s121
      %p125 = scmp.eq.s32.totalorder %s17, 0
      %p126 = por %p124, %p125
      %p127 = scmp.ne.s32.totalorder %s119, %s121
      %p128 = scmp.eq.s32.totalorder %s22, 3
      %p129 = por %p127, %p128
      %p130 = scmp.ne.s32.totalorder %s121, %s122
      %p131 = scmp.eq.s32.totalorder %s22, 0
      %p132 = por %p130, %p131
      %p133 = scmp.ne.s32.totalorder %s121, %s122
      %p134 = scmp.eq.s32.totalorder %s23, 3
      %p135 = por %p133, %p134
      %p137 = scmp.ne.s32.totalorder %s122, %s136
      %p138 = scmp.eq.s32.totalorder %s23, 0
      %p139 = por %p137, %p138
      %s141 = sadd.s32 %s140, 1
      %p144 = scmp.eq.s32.totalorder %s17, 3
      %p145 = scmp.ne.s32.totalorder %s140, %s142
      %p146 = scmp.eq.s32.totalorder %s17, 0
      %p147 = por %p145, %p146
      %p148 = scmp.ne.s32.totalorder %s140, %s142
      %p149 = scmp.eq.s32.totalorder %s22, 3
      %p150 = por %p148, %p149
      %p151 = scmp.ne.s32.totalorder %s142, %s143
      %p152 = scmp.eq.s32.totalorder %s22, 0
      %p153 = por %p151, %p152
      %p154 = scmp.ne.s32.totalorder %s142, %s143
      %p155 = scmp.eq.s32.totalorder %s23, 3
      %p156 = por %p154, %p155
      %p158 = scmp.ne.s32.totalorder %s143, %s157
      %p159 = scmp.eq.s32.totalorder %s23, 0
      %p160 = por %p158, %p159
      %s162 = sadd.s32 %s161, 1
      %p165 = scmp.eq.s32.totalorder %s17, 3
      %p166 = scmp.ne.s32.totalorder %s161, %s163
      %p167 = scmp.eq.s32.totalorder %s17, 0
      %p168 = por %p166, %p167
      %p169 = scmp.ne.s32.totalorder %s161, %s163
      %p170 = scmp.eq.s32.totalorder %s22, 3
      %p171 = por %p169, %p170
      %p172 = scmp.ne.s32.totalorder %s163, %s164
      %p173 = scmp.eq.s32.totalorder %s22, 0
      %p174 = por %p172, %p173
      %p175 = scmp.ne.s32.totalorder %s163, %s164
      %p176 = scmp.eq.s32.totalorder %s23, 3
      %p177 = por %p175, %p176
      %p179 = scmp.ne.s32.totalorder %s164, %s178
      %p180 = scmp.eq.s32.totalorder %s23, 0
      %p181 = por %p179, %p180
      %s183 = sadd.s32 %s182, 1
      %p186 = scmp.eq.s32.totalorder %s17, 3
      %p187 = scmp.ne.s32.totalorder %s182, %s184
      %p188 = scmp.eq.s32.totalorder %s17, 0
      %p189 = por %p187, %p188
      %p190 = scmp.ne.s32.totalorder %s182, %s184
      %p191 = scmp.eq.s32.totalorder %s22, 3
      %p192 = por %p190, %p191
      %p193 = scmp.ne.s32.totalorder %s184, %s185
      %p194 = scmp.eq.s32.totalorder %s22, 0
      %p195 = por %p193, %p194
      %p196 = scmp.ne.s32.totalorder %s184, %s185
      %p197 = scmp.eq.s32.totalorder %s23, 3
      %p198 = por %p196, %p197
      %p200 = scmp.ne.s32.totalorder %s185, %s199
      %p201 = scmp.eq.s32.totalorder %s23, 0
      %p202 = por %p200, %p201
      %s203 = ssub.s32 %s17, %s24
      %p204 = scmp.eq.s32.totalorder %s203, 0
      %s206 = sadd.s32 %s205, 1
      %s207 = scalar_select %p204, %s205, %s206
      %p210 = pneg %p204
      %p211 = scmp.eq.s32.totalorder %s17, 3
      %p212 = por %p210, %p211
      %p213 = scmp.ne.s32.totalorder %s205, %s208
      %p214 = scmp.eq.s32.totalorder %s17, 0
      %p215 = por %p213, %p214
      %p216 = scmp.ne.s32.totalorder %s205, %s208
      %p217 = scmp.eq.s32.totalorder %s22, 3
      %p218 = por %p216, %p217
      %p219 = scmp.ne.s32.totalorder %s208, %s209
      %p220 = scmp.eq.s32.totalorder %s22, 0
      %p221 = por %p219, %p220
      %p222 = scmp.ne.s32.totalorder %s208, %s209
      %p223 = scmp.eq.s32.totalorder %s23, 3
      %p224 = por %p222, %p223
      %p226 = scmp.ne.s32.totalorder %s209, %s225
      %p227 = scmp.eq.s32.totalorder %s23, 0
      %p228 = por %p226, %p227
      %p229 = scmp.le.s32.totalorder 1, %s17
      %p230 = scmp.lt.s32.totalorder %s17, 5
      %p231 = pnand %p229, %p230
      %p232 = pneg %p231
      // Predicated region
      $region9: #{tpu_custom_call.1} parent=5 // pred_check
        _
      $region10: #{tpu_custom_call.1} parent=5 // pred_check_branch
        %234 = sbr.rel (%p231) target = $region12
      $region11: #{tpu_custom_call.1} parent=5 // pred_region
        %s235 = ssub.s32 %s17, 1
        // Predicated region
        $region13: #{tpu_custom_call.1} parent=11 // pred_check
          %p236 = pneg %p90
        $region14: #{tpu_custom_call.1} parent=11 // pred_check_branch
          %238 = sbr.rel (%p236) target = $region16
        $region15: #{tpu_custom_call.1} parent=11 // pred_region
          _
        $region16: #{tpu_custom_call.1} parent=11 // pred_fallthru
          _
        // Predicated region
        $region17: #{tpu_custom_call.1} parent=11 // pred_check
          %p239 = pneg %p111
        $region18: #{tpu_custom_call.1} parent=11 // pred_check_branch
          %241 = sbr.rel (%p239) target = $region20
        $region19: #{tpu_custom_call.1} parent=11 // pred_region
          _
        $region20: #{tpu_custom_call.1} parent=11 // pred_fallthru
          _
        // Predicated region
        $region21: #{tpu_custom_call.1} parent=11 // pred_check
          %p242 = pneg %p132
        $region22: #{tpu_custom_call.1} parent=11 // pred_check_branch
          %244 = sbr.rel (%p242) target = $region24
        $region23: #{tpu_custom_call.1} parent=11 // pred_region
          _
        $region24: #{tpu_custom_call.1} parent=11 // pred_fallthru
          _
        // Predicated region
        $region25: #{tpu_custom_call.1} parent=11 // pred_check
          %p245 = pneg %p153
        $region26: #{tpu_custom_call.1} parent=11 // pred_check_branch
          %247 = sbr.rel (%p245) target = $region28
        $region27: #{tpu_custom_call.1} parent=11 // pred_region
          _
        $region28: #{tpu_custom_call.1} parent=11 // pred_fallthru
          _
        // Predicated region
        $region29: #{tpu_custom_call.1} parent=11 // pred_check
          %p248 = pneg %p174
        $region30: #{tpu_custom_call.1} parent=11 // pred_check_branch
          %250 = sbr.rel (%p248) target = $region32
        $region31: #{tpu_custom_call.1} parent=11 // pred_region
          _
        $region32: #{tpu_custom_call.1} parent=11 // pred_fallthru
          _
        // Predicated region
        $region33: #{tpu_custom_call.1} parent=11 // pred_check
          %p251 = pneg %p195
        $region34: #{tpu_custom_call.1} parent=11 // pred_check_branch
          %253 = sbr.rel (%p251) target = $region36
        $region35: #{tpu_custom_call.1} parent=11 // pred_region
          _
        $region36: #{tpu_custom_call.1} parent=11 // pred_fallthru
          _
      $region12: #{tpu_custom_call.1} parent=5 // pred_fallthru
        _
      %p254 = scmp.lt.s32.totalorder %s17, 4
      // Predicated region
      $region37: #{tpu_custom_call.1} parent=5 // pred_check
        %p255 = pneg %p254
      $region38: #{tpu_custom_call.1} parent=5 // pred_check_branch
        %257 = sbr.rel (%p255) target = $region40
      $region39: #{tpu_custom_call.1} parent=5 // pred_region
        // Predicated region
        $region41: #{tpu_custom_call.1} parent=39 // pred_check
          %p258 = pneg %p37
        $region42: #{tpu_custom_call.1} parent=39 // pred_check_branch
          %260 = sbr.rel (%p258) target = $region44
        $region43: #{tpu_custom_call.1} parent=39 // pred_region
          %p261 = scmp.lt.s32.totalorder %s17, 3
          %s262 = scalar_select %p261, %s17, 3
          %s263 = smul.addr %s262, 6
          %s264 = smul.addr %s263, 8
          %s265 = scalar_lea.vmem %s0, %s264
        $region44: #{tpu_custom_call.1} parent=39 // pred_fallthru
          _
        // Predicated region
        $region45: #{tpu_custom_call.1} parent=39 // pred_check
          %p266 = pneg %p63
        $region46: #{tpu_custom_call.1} parent=39 // pred_check_branch
          %268 = sbr.rel (%p266) target = $region48
        $region47: #{tpu_custom_call.1} parent=39 // pred_region
          %p269 = scmp.lt.s32.totalorder %s17, 3
          %s270 = scalar_select %p269, %s17, 3
          %s271 = smul.addr %s270, 16
          %s272 = smul.addr %s271, 8
          %s273 = scalar_lea.vmem %s1, %s272
        $region48: #{tpu_custom_call.1} parent=39 // pred_fallthru
          _
      $region40: #{tpu_custom_call.1} parent=5 // pred_fallthru
        _
      %p274 = scmp.le.s32.totalorder 1, %s17
      %p275 = scmp.lt.s32.totalorder %s17, 5
      %p276 = pnand %p274, %p275
      %p277 = pneg %p276
      // Predicated region
      $region49: #{tpu_custom_call.1} parent=5 // pred_check
        _
      $region50: #{tpu_custom_call.1} parent=5 // pred_check_branch
        %279 = sbr.rel (%p276) target = $region52
      $region51: #{tpu_custom_call.1} parent=5 // pred_region
        %s280 = ssub.s32 %s17, 1
        %p281 = scmp.lt.s32.totalorder %s22, 3
        %s282 = scalar_select %p281, %s22, 3
        %s283 = smul.addr %s282, 6
        %s284 = smul.addr %s283, 8
        %s285 = scalar_lea.vmem %s0, %s284
        %p286 = pneg %p43
        %p287 = pneg %p40
        %p288 = scmp.lt.s32.totalorder %s22, 3
        %s289 = scalar_select %p288, %s22, 3
        %s290 = smul.addr %s289, 16
        %s291 = smul.addr %s290, 8
        %s292 = scalar_lea.vmem %s1, %s291
        %p293 = pneg %p69
        %p294 = pneg %p66
        %p295 = pneg %p90
        %p296 = pneg %p87
        %p297 = pneg %p111
        %p298 = pneg %p108
        %p299 = pneg %p132
        %p300 = pneg %p129
        %p301 = pneg %p153
        %p302 = pneg %p150
        %p303 = pneg %p174
        %p304 = pneg %p171
        %p305 = pneg %p195
        %p306 = pneg %p192
        %p307 = pneg %p221
        %p308 = pneg %p218
        %s309 = sand.u32 %s208, 1
        %s310 = scalar_lea.sflag [#allocation3], %s309
        %s311 = sand.u32 %s208, 1
        %s312 = smul.addr %s311, 32
        %s313 = scalar_lea.vmem [#allocation2], %s312
        %p314 = scmp.lt.s32.totalorder %s22, 3
        %s315 = scalar_select %p314, %s22, 3
        %s316 = smul.addr %s315, 6
        %s317 = smul.addr %s316, 8
        %s318 = scalar_lea.vmem %s0, %s317
        %p319 = scmp.lt.s32.totalorder %s22, 3
        %s320 = scalar_select %p319, %s22, 3
        %s321 = smul.addr %s320, 16
        %s322 = smul.addr %s321, 8
        %s323 = scalar_lea.vmem %s1, %s322
        %v324 = vld [vmem:[%s6] sm:$0xff]
        %v325 = vld [vmem:[%s6 + $0x8] sm:$0xff]
        %v326 = vld [vmem:[%s6 + $0x10] sm:$0xff]
        %v327 = vld [vmem:[%s6 + $0x18] sm:$0xff]
        %s328 = scalar_lea.vmem %s6, 32
        %v329 = vld [vmem:[%s328] sm:$0xff]
        %v330 = vld [vmem:[%s328 + $0x8] sm:$0xff]
        %v331 = vld [vmem:[%s328 + $0x10] sm:$0xff]
        %v332 = vld [vmem:[%s328 + $0x18] sm:$0xff]
        %s333 = scalar_lea.vmem %s6, 64
        %v334 = vld [vmem:[%s333] sm:$0xff]
        %v335 = vld [vmem:[%s333 + $0x8] sm:$0xff]
        %v336 = vld [vmem:[%s333 + $0x10] sm:$0xff]
        %v337 = vld [vmem:[%s333 + $0x18] sm:$0xff]
        %s338 = scalar_lea.vmem %s6, 96
        %v339 = vld [vmem:[%s338] sm:$0xff]
        %v340 = vld [vmem:[%s338 + $0x8] sm:$0xff]
        %v341 = vld [vmem:[%s338 + $0x10] sm:$0xff]
        %v342 = vld [vmem:[%s338 + $0x18] sm:$0xff]
        %s343 = scalar_lea.vmem %s6, 128
        %v344 = vld [vmem:[%s343] sm:$0xff]
        %v345 = vld [vmem:[%s343 + $0x8] sm:$0xff]
        %v346 = vld [vmem:[%s343 + $0x10] sm:$0xff]
        %v347 = vld [vmem:[%s343 + $0x18] sm:$0xff]
        %s348 = scalar_lea.vmem %s6, 160
        %v349 = vld [vmem:[%s348] sm:$0xff]
        %v350 = vld [vmem:[%s348 + $0x8] sm:$0xff]
        %v351 = vld [vmem:[%s348 + $0x10] sm:$0xff]
        %v352 = vld [vmem:[%s348 + $0x18] sm:$0xff]
        %s353 = scalar_lea.vmem %s6, 192
        %v354 = vld [vmem:[%s353] sm:$0xff]
        %v355 = vld [vmem:[%s353 + $0x8] sm:$0xff]
        %v356 = vld [vmem:[%s353 + $0x10] sm:$0xff]
        %v357 = vld [vmem:[%s353 + $0x18] sm:$0xff]
        %v358 = vld [vmem:[%s7] sm:$0x1]
        %s359 = scalar_lea.vmem %s7, 1
        %v360 = vld [vmem:[%s359] sm:$0x1]
        %s361 = scalar_lea.vmem %s7, 2
        %v362 = vld [vmem:[%s361] sm:$0x1]
        %s363 = scalar_lea.vmem %s7, 3
        %v364 = vld [vmem:[%s363] sm:$0x1]
        %s365 = scalar_lea.vmem %s7, 4
        %v366 = vld [vmem:[%s365] sm:$0x1]
        %v367 = vld [vmem:[%s2] sm:$0xff]
        %v368 = vld [vmem:[%s2 + $0x8] sm:$0xff]
        %v369 = vld [vmem:[%s2 + $0x10] sm:$0xff]
        %v370 = vld [vmem:[%s2 + $0x18] sm:$0xff]
        %v371 = vld [vmem:[%s2 + $0x20] sm:$0xff]
        %v372 = vld [vmem:[%s2 + $0x28] sm:$0xff]
        %v373 = vld [vmem:[%s2 + $0x30] sm:$0xff]
        %v374 = vld [vmem:[%s2 + $0x38] sm:$0xff]
        %v375 = vld [vmem:[%s2 + $0x40] sm:$0xff]
        %v376 = vld [vmem:[%s2 + $0x48] sm:$0xff]
        %v377 = vld [vmem:[%s2 + $0x50] sm:$0xff]
        %v378 = vld [vmem:[%s2 + $0x58] sm:$0xff]
        %v379 = vld [vmem:[%s2 + $0x60] sm:$0xff]
        %v380 = vld [vmem:[%s2 + $0x68] sm:$0xff]
        %v381 = vld [vmem:[%s2 + $0x70] sm:$0xff]
        %v382 = vld [vmem:[%s2 + $0x78] sm:$0xff]
        %v383 = vld [vmem:[%s3] sm:$0xff]
        %v384 = vld [vmem:[%s3 + $0x8] sm:$0xff]
        %v385 = vld [vmem:[%s3 + $0x10] sm:$0xff]
        %v386 = vld [vmem:[%s3 + $0x18] sm:$0xff]
        %v387 = vld [vmem:[%s3 + $0x20] sm:$0xff]
        %v388 = vld [vmem:[%s3 + $0x28] sm:$0xff]
        %v389 = vld [vmem:[%s3 + $0x30] sm:$0xff]
        %v390 = vld [vmem:[%s3 + $0x38] sm:$0xff]
        %v391 = vld [vmem:[%s3 + $0x40] sm:$0xff]
        %v392 = vld [vmem:[%s3 + $0x48] sm:$0xff]
        %v393 = vld [vmem:[%s3 + $0x50] sm:$0xff]
        %v394 = vld [vmem:[%s3 + $0x58] sm:$0xff]
        %v395 = vld [vmem:[%s318] sm:$0xff]
        %v396 = vld [vmem:[%s318 + $0x8] sm:$0xff]
        %v397 = vld [vmem:[%s318 + $0x10] sm:$0xff]
        %v398 = vld [vmem:[%s318 + $0x18] sm:$0xff]
        %v399 = vld [vmem:[%s318 + $0x20] sm:$0xff]
        %v400 = vld [vmem:[%s318 + $0x28] sm:$0xff]
        %v401 = vld [vmem:[%s323] sm:$0xff]
        %v402 = vld [vmem:[%s323 + $0x8] sm:$0xff]
        %v403 = vld [vmem:[%s323 + $0x10] sm:$0xff]
        %v404 = vld [vmem:[%s323 + $0x18] sm:$0xff]
        %v405 = vld [vmem:[%s323 + $0x20] sm:$0xff]
        %v406 = vld [vmem:[%s323 + $0x28] sm:$0xff]
        %v407 = vld [vmem:[%s323 + $0x30] sm:$0xff]
        %v408 = vld [vmem:[%s323 + $0x38] sm:$0xff]
        %v409 = vld [vmem:[%s323 + $0x40] sm:$0xff]
        %v410 = vld [vmem:[%s323 + $0x48] sm:$0xff]
        %v411 = vld [vmem:[%s323 + $0x50] sm:$0xff]
        %v412 = vld [vmem:[%s323 + $0x58] sm:$0xff]
        %v413 = vld [vmem:[%s323 + $0x60] sm:$0xff]
        %v414 = vld [vmem:[%s323 + $0x68] sm:$0xff]
        %v415 = vld [vmem:[%s323 + $0x70] sm:$0xff]
        %v416 = vld [vmem:[%s323 + $0x78] sm:$0xff]
        %v418 = vperm.slane %v358, 0
        %vm420 = vcmask 261120
        %v422 = vsel %vm420, %v401, 0
        %v425 = vsel %vm420, %v402, 0
        %v428 = vsel %vm420, %v403, 0
        %v431 = vsel %vm420, %v404, 0
        %v434 = vsel %vm420, %v405, 0
        %v437 = vsel %vm420, %v406, 0
        %v440 = vsel %vm420, %v407, 0
        %v443 = vsel %vm420, %v408, 0
        %v446 = vsel %vm420, %v409, 0
        %v449 = vsel %vm420, %v410, 0
        %v452 = vsel %vm420, %v411, 0
        %v455 = vsel %vm420, %v412, 0
        %v458 = vsel %vm420, %v413, 0
        %v461 = vsel %vm420, %v414, 0
        %v464 = vsel %vm420, %v415, 0
        %v467 = vsel %vm420, %v416, 0
        %469 = vmatpush.msra.mxu0 0.0
        %470 = vmatpush.msra.mxu0 0.0
        %471 = vmatpush.msra.mxu0 0.0
        %472 = vmatpush.msra.mxu0 0.0
        %473 = vmatpush.msra.mxu0 0.0
        %474 = vmatpush.msra.mxu0 0.0
        %475 = vmatpush.msra.mxu0 0.0
        %476 = vmatpush.msra.mxu0 0.0
        %477 = vmatpush.msra.mxu0 0.0
        %478 = vmatpush.msra.mxu0 0.0
        %479 = vmatpush.msra.mxu0 0.0
        %480 = vmatpush.msra.mxu0 0.0
        %481 = vmatpush.msra.mxu0 %v332
        %482 = vmatpush.msra.mxu0 %v331
        %483 = vmatpush.msra.mxu0 %v330
        %484 = vmatpush.msra.mxu0 %v329
        %485 = vmatmul.f32.gmra.mxu0 %v422
        %v486 = vpop.f32.mrf.mxu0
        %v487 = vadd.f32 %v418, %v486
        %488 = vmatmul.f32.gmra.mxu0 %v425
        %v489 = vpop.f32.mrf.mxu0
        %v490 = vadd.f32 %v418, %v489
        %491 = vmatmul.f32.gmra.mxu0 %v428
        %v492 = vpop.f32.mrf.mxu0
        %v493 = vadd.f32 %v418, %v492
        %494 = vmatmul.f32.gmra.mxu0 %v431
        %v495 = vpop.f32.mrf.mxu0
        %v496 = vadd.f32 %v418, %v495
        %497 = vmatmul.f32.gmra.mxu0 %v434
        %v498 = vpop.f32.mrf.mxu0
        %v499 = vadd.f32 %v418, %v498
        %500 = vmatmul.f32.gmra.mxu0 %v437
        %v501 = vpop.f32.mrf.mxu0
        %v502 = vadd.f32 %v418, %v501
        %503 = vmatmul.f32.gmra.mxu0 %v440
        %v504 = vpop.f32.mrf.mxu0
        %v505 = vadd.f32 %v418, %v504
        %506 = vmatmul.f32.gmra.mxu0 %v443
        %v507 = vpop.f32.mrf.mxu0
        %v508 = vadd.f32 %v418, %v507
        %509 = vmatmul.f32.gmra.mxu0 %v446
        %v510 = vpop.f32.mrf.mxu0
        %v511 = vadd.f32 %v418, %v510
        %512 = vmatmul.f32.gmra.mxu0 %v449
        %v513 = vpop.f32.mrf.mxu0
        %v514 = vadd.f32 %v418, %v513
        %515 = vmatmul.f32.gmra.mxu0 %v452
        %v516 = vpop.f32.mrf.mxu0
        %v517 = vadd.f32 %v418, %v516
        %518 = vmatmul.f32.gmra.mxu0 %v455
        %v519 = vpop.f32.mrf.mxu0
        %v520 = vadd.f32 %v418, %v519
        %521 = vmatmul.f32.gmra.mxu0 %v458
        %v522 = vpop.f32.mrf.mxu0
        %v523 = vadd.f32 %v418, %v522
        %524 = vmatmul.f32.gmra.mxu0 %v461
        %v525 = vpop.f32.mrf.mxu0
        %v526 = vadd.f32 %v418, %v525
        %527 = vmatmul.f32.gmra.mxu0 %v464
        %v528 = vpop.f32.mrf.mxu0
        %v529 = vadd.f32 %v418, %v528
        %530 = vmatmul.f32.gmra.mxu0 %v467
        %v531 = vpop.f32.mrf.mxu0
        %v532 = vadd.f32 %v418, %v531
        %533 = vdwg.mxu0
        %v535 = vsel %vm420, %v395, 0
        %v538 = vsel %vm420, %v396, 0
        %v541 = vsel %vm420, %v397, 0
        %v544 = vsel %vm420, %v398, 0
        %v547 = vsel %vm420, %v399, 0
        %v550 = vsel %vm420, %v400, 0
        %552 = vmatpush.msra.mxu0 0.0
        %553 = vmatpush.msra.mxu0 0.0
        %554 = vmatpush.msra.mxu0 0.0
        %555 = vmatpush.msra.mxu0 0.0
        %556 = vmatpush.msra.mxu0 0.0
        %557 = vmatpush.msra.mxu0 0.0
        %558 = vmatpush.msra.mxu0 0.0
        %559 = vmatpush.msra.mxu0 0.0
        %560 = vmatpush.msra.mxu0 0.0
        %561 = vmatpush.msra.mxu0 0.0
        %562 = vmatpush.msra.mxu0 0.0
        %563 = vmatpush.msra.mxu0 0.0
        %564 = vmatpush.msra.mxu0 %v327
        %565 = vmatpush.msra.mxu0 %v326
        %566 = vmatpush.msra.mxu0 %v325
        %567 = vmatpush.msra.mxu0 %v324
        %568 = vmatmul.f32.gmra.mxu0 %v535
        %v569 = vpop.f32.mrf.mxu0
        %v570 = vadd.f32 0.0, %v569
        %571 = vmatmul.f32.gmra.mxu0 %v538
        %v572 = vpop.f32.mrf.mxu0
        %v573 = vadd.f32 0.0, %v572
        %574 = vmatmul.f32.gmra.mxu0 %v541
        %v575 = vpop.f32.mrf.mxu0
        %v576 = vadd.f32 0.0, %v575
        %577 = vmatmul.f32.gmra.mxu0 %v544
        %v578 = vpop.f32.mrf.mxu0
        %v579 = vadd.f32 0.0, %v578
        %580 = vmatmul.f32.gmra.mxu0 %v547
        %v581 = vpop.f32.mrf.mxu0
        %v582 = vadd.f32 0.0, %v581
        %583 = vmatmul.f32.gmra.mxu0 %v550
        %v584 = vpop.f32.mrf.mxu0
        %v585 = vadd.f32 0.0, %v584
        %586 = vdwg.mxu0
        %vm587 = vcmask 392192
        %v589 = vsel %vm587, %v367, 0
        %v592 = vsel %vm587, %v368, 0
        %v595 = vsel %vm587, %v369, 0
        %v598 = vsel %vm587, %v370, 0
        %v601 = vsel %vm587, %v371, 0
        %v604 = vsel %vm587, %v372, 0
        %v607 = vsel %vm587, %v373, 0
        %v610 = vsel %vm587, %v374, 0
        %v613 = vsel %vm587, %v375, 0
        %v616 = vsel %vm587, %v376, 0
        %v619 = vsel %vm587, %v377, 0
        %v622 = vsel %vm587, %v378, 0
        %v625 = vsel %vm587, %v379, 0
        %v628 = vsel %vm587, %v380, 0
        %v631 = vsel %vm587, %v381, 0
        %v634 = vsel %vm587, %v382, 0
        %636 = vmatpush.msra.mxu0 0.0
        %637 = vmatpush.msra.mxu0 0.0
        %638 = vmatpush.msra.mxu0 0.0
        %639 = vmatpush.msra.mxu0 0.0
        %640 = vmatpush.msra.mxu0 0.0
        %641 = vmatpush.msra.mxu0 0.0
        %642 = vmatpush.msra.mxu0 0.0
        %643 = vmatpush.msra.mxu0 0.0
        %644 = vmatpush.msra.mxu0 0.0
        %645 = vmatpush.msra.mxu0 0.0
        %646 = vmatpush.msra.mxu0 %v585
        %647 = vmatpush.msra.mxu0 %v582
        %648 = vmatpush.msra.mxu0 %v579
        %649 = vmatpush.msra.mxu0 %v576
        %650 = vmatpush.msra.mxu0 %v573
        %651 = vmatpush.msra.mxu0 %v570
        %652 = vmatmul.f32.gmra.mxu0 %v589
        %v653 = vpop.f32.mrf.mxu0
        %v654 = vadd.f32 %v487, %v653
        %655 = vmatmul.f32.gmra.mxu0 %v592
        %v656 = vpop.f32.mrf.mxu0
        %v657 = vadd.f32 %v490, %v656
        %658 = vmatmul.f32.gmra.mxu0 %v595
        %v659 = vpop.f32.mrf.mxu0
        %v660 = vadd.f32 %v493, %v659
        %661 = vmatmul.f32.gmra.mxu0 %v598
        %v662 = vpop.f32.mrf.mxu0
        %v663 = vadd.f32 %v496, %v662
        %664 = vmatmul.f32.gmra.mxu0 %v601
        %v665 = vpop.f32.mrf.mxu0
        %v666 = vadd.f32 %v499, %v665
        %667 = vmatmul.f32.gmra.mxu0 %v604
        %v668 = vpop.f32.mrf.mxu0
        %v669 = vadd.f32 %v502, %v668
        %670 = vmatmul.f32.gmra.mxu0 %v607
        %v671 = vpop.f32.mrf.mxu0
        %v672 = vadd.f32 %v505, %v671
        %673 = vmatmul.f32.gmra.mxu0 %v610
        %v674 = vpop.f32.mrf.mxu0
        %v675 = vadd.f32 %v508, %v674
        %676 = vmatmul.f32.gmra.mxu0 %v613
        %v677 = vpop.f32.mrf.mxu0
        %v678 = vadd.f32 %v511, %v677
        %679 = vmatmul.f32.gmra.mxu0 %v616
        %v680 = vpop.f32.mrf.mxu0
        %v681 = vadd.f32 %v514, %v680
        %682 = vmatmul.f32.gmra.mxu0 %v619
        %v683 = vpop.f32.mrf.mxu0
        %v684 = vadd.f32 %v517, %v683
        %685 = vmatmul.f32.gmra.mxu0 %v622
        %v686 = vpop.f32.mrf.mxu0
        %v687 = vadd.f32 %v520, %v686
        %688 = vmatmul.f32.gmra.mxu0 %v625
        %v689 = vpop.f32.mrf.mxu0
        %v690 = vadd.f32 %v523, %v689
        %691 = vmatmul.f32.gmra.mxu0 %v628
        %v692 = vpop.f32.mrf.mxu0
        %v693 = vadd.f32 %v526, %v692
        %694 = vmatmul.f32.gmra.mxu0 %v631
        %v695 = vpop.f32.mrf.mxu0
        %v696 = vadd.f32 %v529, %v695
        %697 = vmatmul.f32.gmra.mxu0 %v634
        %v698 = vpop.f32.mrf.mxu0
        %v699 = vadd.f32 %v532, %v698
        %700 = vdwg.mxu0
        %v701 = vmul.f32 %v654, 0.01
        %v702 = vmul.f32 %v657, 0.01
        %v703 = vmul.f32 %v660, 0.01
        %v704 = vmul.f32 %v663, 0.01
        %v705 = vmul.f32 %v666, 0.01
        %v706 = vmul.f32 %v669, 0.01
        %v707 = vmul.f32 %v672, 0.01
        %v708 = vmul.f32 %v675, 0.01
        %v709 = vmul.f32 %v678, 0.01
        %v710 = vmul.f32 %v681, 0.01
        %v711 = vmul.f32 %v684, 0.01
        %v712 = vmul.f32 %v687, 0.01
        %v713 = vmul.f32 %v690, 0.01
        %v714 = vmul.f32 %v693, 0.01
        %v715 = vmul.f32 %v696, 0.01
        %v716 = vmul.f32 %v699, 0.01
        %v717 = vmax.f32 %v654, %v701
        %v718 = vmax.f32 %v657, %v702
        %v719 = vmax.f32 %v660, %v703
        %v720 = vmax.f32 %v663, %v704
        %v721 = vmax.f32 %v666, %v705
        %v722 = vmax.f32 %v669, %v706
        %v723 = vmax.f32 %v672, %v707
        %v724 = vmax.f32 %v675, %v708
        %v725 = vmax.f32 %v678, %v709
        %v726 = vmax.f32 %v681, %v710
        %v727 = vmax.f32 %v684, %v711
        %v728 = vmax.f32 %v687, %v712
        %v729 = vmax.f32 %v690, %v713
        %v730 = vmax.f32 %v693, %v714
        %v731 = vmax.f32 %v696, %v715
        %v732 = vmax.f32 %v699, %v716
        %v734 = vperm.slane %v360, 0
        %v737 = vsel %vm420, %v717, 0
        %v740 = vsel %vm420, %v718, 0
        %v743 = vsel %vm420, %v719, 0
        %v746 = vsel %vm420, %v720, 0
        %v749 = vsel %vm420, %v721, 0
        %v752 = vsel %vm420, %v722, 0
        %v755 = vsel %vm420, %v723, 0
        %v758 = vsel %vm420, %v724, 0
        %v761 = vsel %vm420, %v725, 0
        %v764 = vsel %vm420, %v726, 0
        %v767 = vsel %vm420, %v727, 0
        %v770 = vsel %vm420, %v728, 0
        %v773 = vsel %vm420, %v729, 0
        %v776 = vsel %vm420, %v730, 0
        %v779 = vsel %vm420, %v731, 0
        %v782 = vsel %vm420, %v732, 0
        %784 = vmatpush.msra.mxu0 0.0
        %785 = vmatpush.msra.mxu0 0.0
        %786 = vmatpush.msra.mxu0 0.0
        %787 = vmatpush.msra.mxu0 0.0
        %788 = vmatpush.msra.mxu0 0.0
        %789 = vmatpush.msra.mxu0 0.0
        %790 = vmatpush.msra.mxu0 0.0
        %791 = vmatpush.msra.mxu0 0.0
        %792 = vmatpush.msra.mxu0 0.0
        %793 = vmatpush.msra.mxu0 0.0
        %794 = vmatpush.msra.mxu0 0.0
        %795 = vmatpush.msra.mxu0 0.0
        %796 = vmatpush.msra.mxu0 %v337
        %797 = vmatpush.msra.mxu0 %v336
        %798 = vmatpush.msra.mxu0 %v335
        %799 = vmatpush.msra.mxu0 %v334
        %800 = vmatmul.f32.gmra.mxu0 %v737
        %v801 = vpop.f32.mrf.mxu0
        %v802 = vadd.f32 %v734, %v801
        %803 = vmatmul.f32.gmra.mxu0 %v740
        %v804 = vpop.f32.mrf.mxu0
        %v805 = vadd.f32 %v734, %v804
        %806 = vmatmul.f32.gmra.mxu0 %v743
        %v807 = vpop.f32.mrf.mxu0
        %v808 = vadd.f32 %v734, %v807
        %809 = vmatmul.f32.gmra.mxu0 %v746
        %v810 = vpop.f32.mrf.mxu0
        %v811 = vadd.f32 %v734, %v810
        %812 = vmatmul.f32.gmra.mxu0 %v749
        %v813 = vpop.f32.mrf.mxu0
        %v814 = vadd.f32 %v734, %v813
        %815 = vmatmul.f32.gmra.mxu0 %v752
        %v816 = vpop.f32.mrf.mxu0
        %v817 = vadd.f32 %v734, %v816
        %818 = vmatmul.f32.gmra.mxu0 %v755
        %v819 = vpop.f32.mrf.mxu0
        %v820 = vadd.f32 %v734, %v819
        %821 = vmatmul.f32.gmra.mxu0 %v758
        %v822 = vpop.f32.mrf.mxu0
        %v823 = vadd.f32 %v734, %v822
        %824 = vmatmul.f32.gmra.mxu0 %v761
        %v825 = vpop.f32.mrf.mxu0
        %v826 = vadd.f32 %v734, %v825
        %827 = vmatmul.f32.gmra.mxu0 %v764
        %v828 = vpop.f32.mrf.mxu0
        %v829 = vadd.f32 %v734, %v828
        %830 = vmatmul.f32.gmra.mxu0 %v767
        %v831 = vpop.f32.mrf.mxu0
        %v832 = vadd.f32 %v734, %v831
        %833 = vmatmul.f32.gmra.mxu0 %v770
        %v834 = vpop.f32.mrf.mxu0
        %v835 = vadd.f32 %v734, %v834
        %836 = vmatmul.f32.gmra.mxu0 %v773
        %v837 = vpop.f32.mrf.mxu0
        %v838 = vadd.f32 %v734, %v837
        %839 = vmatmul.f32.gmra.mxu0 %v776
        %v840 = vpop.f32.mrf.mxu0
        %v841 = vadd.f32 %v734, %v840
        %842 = vmatmul.f32.gmra.mxu0 %v779
        %v843 = vpop.f32.mrf.mxu0
        %v844 = vadd.f32 %v734, %v843
        %845 = vmatmul.f32.gmra.mxu0 %v782
        %v846 = vpop.f32.mrf.mxu0
        %v847 = vadd.f32 %v734, %v846
        %848 = vdwg.mxu0
        %v849 = vmul.f32 %v802, 0.01
        %v850 = vmul.f32 %v805, 0.01
        %v851 = vmul.f32 %v808, 0.01
        %v852 = vmul.f32 %v811, 0.01
        %v853 = vmul.f32 %v814, 0.01
        %v854 = vmul.f32 %v817, 0.01
        %v855 = vmul.f32 %v820, 0.01
        %v856 = vmul.f32 %v823, 0.01
        %v857 = vmul.f32 %v826, 0.01
        %v858 = vmul.f32 %v829, 0.01
        %v859 = vmul.f32 %v832, 0.01
        %v860 = vmul.f32 %v835, 0.01
        %v861 = vmul.f32 %v838, 0.01
        %v862 = vmul.f32 %v841, 0.01
        %v863 = vmul.f32 %v844, 0.01
        %v864 = vmul.f32 %v847, 0.01
        %v865 = vmax.f32 %v802, %v849
        %v866 = vmax.f32 %v805, %v850
        %v867 = vmax.f32 %v808, %v851
        %v868 = vmax.f32 %v811, %v852
        %v869 = vmax.f32 %v814, %v853
        %v870 = vmax.f32 %v817, %v854
        %v871 = vmax.f32 %v820, %v855
        %v872 = vmax.f32 %v823, %v856
        %v873 = vmax.f32 %v826, %v857
        %v874 = vmax.f32 %v829, %v858
        %v875 = vmax.f32 %v832, %v859
        %v876 = vmax.f32 %v835, %v860
        %v877 = vmax.f32 %v838, %v861
        %v878 = vmax.f32 %v841, %v862
        %v879 = vmax.f32 %v844, %v863
        %v880 = vmax.f32 %v847, %v864
        %881 = vmatpush.msra.mxu0 %v880
        %882 = vmatpush.msra.mxu0 %v879
        %883 = vmatpush.msra.mxu0 %v878
        %884 = vmatpush.msra.mxu0 %v877
        %885 = vmatpush.msra.mxu0 %v876
        %886 = vmatpush.msra.mxu0 %v875
        %887 = vmatpush.msra.mxu0 %v874
        %888 = vmatpush.msra.mxu0 %v873
        %889 = vmatpush.msra.mxu0 %v872
        %890 = vmatpush.msra.mxu0 %v871
        %891 = vmatpush.msra.mxu0 %v870
        %892 = vmatpush.msra.mxu0 %v869
        %893 = vmatpush.msra.mxu0 %v868
        %894 = vmatpush.msra.mxu0 %v867
        %895 = vmatpush.msra.mxu0 %v866
        %896 = vmatpush.msra.mxu0 %v865
        %897 = vmatmul.f32.gmra.mxu0 %v383
        %v898 = vpop.f32.mrf.mxu0
        %v899 = vadd.f32 0.0, %v898
        %900 = vmatmul.f32.gmra.mxu0 %v384
        %v901 = vpop.f32.mrf.mxu0
        %v902 = vadd.f32 0.0, %v901
        %903 = vmatmul.f32.gmra.mxu0 %v385
        %v904 = vpop.f32.mrf.mxu0
        %v905 = vadd.f32 0.0, %v904
        %906 = vmatmul.f32.gmra.mxu0 %v386
        %v907 = vpop.f32.mrf.mxu0
        %v908 = vadd.f32 0.0, %v907
        %909 = vmatmul.f32.gmra.mxu0 %v387
        %v910 = vpop.f32.mrf.mxu0
        %v911 = vadd.f32 0.0, %v910
        %912 = vmatmul.f32.gmra.mxu0 %v388
        %v913 = vpop.f32.mrf.mxu0
        %v914 = vadd.f32 0.0, %v913
        %915 = vmatmul.f32.gmra.mxu0 %v389
        %v916 = vpop.f32.mrf.mxu0
        %v917 = vadd.f32 0.0, %v916
        %918 = vmatmul.f32.gmra.mxu0 %v390
        %v919 = vpop.f32.mrf.mxu0
        %v920 = vadd.f32 0.0, %v919
        %921 = vmatmul.f32.gmra.mxu0 %v391
        %v922 = vpop.f32.mrf.mxu0
        %v923 = vadd.f32 0.0, %v922
        %924 = vmatmul.f32.gmra.mxu0 %v392
        %v925 = vpop.f32.mrf.mxu0
        %v926 = vadd.f32 0.0, %v925
        %927 = vmatmul.f32.gmra.mxu0 %v393
        %v928 = vpop.f32.mrf.mxu0
        %v929 = vadd.f32 0.0, %v928
        %930 = vmatmul.f32.gmra.mxu0 %v394
        %v931 = vpop.f32.mrf.mxu0
        %v932 = vadd.f32 0.0, %v931
        %933 = vdwg.mxu0
        %934 = vmatpush.msra.mxu0 0.0
        %935 = vmatpush.msra.mxu0 0.0
        %936 = vmatpush.msra.mxu0 0.0
        %937 = vmatpush.msra.mxu0 0.0
        %938 = vmatpush.msra.mxu0 0.0
        %939 = vmatpush.msra.mxu0 0.0
        %940 = vmatpush.msra.mxu0 0.0
        %941 = vmatpush.msra.mxu0 0.0
        %942 = vmatpush.msra.mxu0 0.0
        %943 = vmatpush.msra.mxu0 0.0
        %944 = vmatpush.msra.mxu0 0.0
        %945 = vmatpush.msra.mxu0 0.0
        %946 = vmatpush.msra.mxu0 %v342
        %947 = vmatpush.msra.mxu0 %v341
        %948 = vmatpush.msra.mxu0 %v340
        %949 = vmatpush.msra.mxu0 %v339
        %950 = vmatmul.f32.gmra.mxu0 %v547
        %v951 = vpop.f32.mrf.mxu0
        %v952 = vadd.f32 0.0, %v951
        %953 = vmatmul.f32.gmra.mxu0 %v550
        %v954 = vpop.f32.mrf.mxu0
        %v955 = vadd.f32 0.0, %v954
        %956 = vdwg.mxu0
        %957 = vmatpush.msra.mxu0 0.0
        %958 = vmatpush.msra.mxu0 0.0
        %959 = vmatpush.msra.mxu0 0.0
        %960 = vmatpush.msra.mxu0 0.0
        %961 = vmatpush.msra.mxu0 0.0
        %962 = vmatpush.msra.mxu0 0.0
        %963 = vmatpush.msra.mxu0 0.0
        %964 = vmatpush.msra.mxu0 0.0
        %965 = vmatpush.msra.mxu0 0.0
        %966 = vmatpush.msra.mxu0 0.0
        %967 = vmatpush.msra.mxu0 0.0
        %968 = vmatpush.msra.mxu0 0.0
        %969 = vmatpush.msra.mxu0 %v342
        %970 = vmatpush.msra.mxu0 %v341
        %971 = vmatpush.msra.mxu0 %v340
        %972 = vmatpush.msra.mxu0 %v339
        %973 = vmatmul.f32.gmra.mxu0 %v535
        %v974 = vpop.f32.mrf.mxu0
        %v975 = vadd.f32 0.0, %v974
        %976 = vmatmul.f32.gmra.mxu0 %v538
        %v977 = vpop.f32.mrf.mxu0
        %v978 = vadd.f32 0.0, %v977
        %979 = vmatmul.f32.gmra.mxu0 %v541
        %v980 = vpop.f32.mrf.mxu0
        %v981 = vadd.f32 0.0, %v980
        %982 = vmatmul.f32.gmra.mxu0 %v544
        %v983 = vpop.f32.mrf.mxu0
        %v984 = vadd.f32 0.0, %v983
        %985 = vdwg.mxu0
        %v987 = vsel %vm420, %v899, 0
        %v990 = vsel %vm420, %v902, 0
        %v993 = vsel %vm420, %v905, 0
        %v996 = vsel %vm420, %v908, 0
        %v999 = vsel %vm420, %v911, 0
        %v1002 = vsel %vm420, %v914, 0
        %v1005 = vsel %vm420, %v917, 0
        %v1008 = vsel %vm420, %v920, 0
        %v1011 = vsel %vm420, %v923, 0
        %v1014 = vsel %vm420, %v926, 0
        %v1017 = vsel %vm420, %v929, 0
        %v1020 = vsel %vm420, %v932, 0
        %1022 = vmatpush.msra.mxu0 0.0
        %1023 = vmatpush.msra.mxu0 0.0
        %1024 = vmatpush.msra.mxu0 0.0
        %1025 = vmatpush.msra.mxu0 0.0
        %1026 = vmatpush.msra.mxu0 0.0
        %1027 = vmatpush.msra.mxu0 0.0
        %1028 = vmatpush.msra.mxu0 0.0
        %1029 = vmatpush.msra.mxu0 0.0
        %1030 = vmatpush.msra.mxu0 0.0
        %1031 = vmatpush.msra.mxu0 0.0
        %1032 = vmatpush.msra.mxu0 0.0
        %1033 = vmatpush.msra.mxu0 0.0
        %1034 = vmatpush.msra.mxu0 %v347
        %1035 = vmatpush.msra.mxu0 %v346
        %1036 = vmatpush.msra.mxu0 %v345
        %1037 = vmatpush.msra.mxu0 %v344
        %1038 = vmatmul.f32.gmra.mxu0 %v987
        %v1039 = vpop.f32.mrf.mxu0
        %v1040 = vadd.f32 0.0, %v1039
        %1041 = vmatmul.f32.gmra.mxu0 %v990
        %v1042 = vpop.f32.mrf.mxu0
        %v1043 = vadd.f32 0.0, %v1042
        %1044 = vmatmul.f32.gmra.mxu0 %v993
        %v1045 = vpop.f32.mrf.mxu0
        %v1046 = vadd.f32 0.0, %v1045
        %1047 = vmatmul.f32.gmra.mxu0 %v996
        %v1048 = vpop.f32.mrf.mxu0
        %v1049 = vadd.f32 0.0, %v1048
        %1050 = vmatmul.f32.gmra.mxu0 %v999
        %v1051 = vpop.f32.mrf.mxu0
        %v1052 = vadd.f32 0.0, %v1051
        %1053 = vmatmul.f32.gmra.mxu0 %v1002
        %v1054 = vpop.f32.mrf.mxu0
        %v1055 = vadd.f32 0.0, %v1054
        %1056 = vmatmul.f32.gmra.mxu0 %v1005
        %v1057 = vpop.f32.mrf.mxu0
        %v1058 = vadd.f32 0.0, %v1057
        %1059 = vmatmul.f32.gmra.mxu0 %v1008
        %v1060 = vpop.f32.mrf.mxu0
        %v1061 = vadd.f32 0.0, %v1060
        %1062 = vmatmul.f32.gmra.mxu0 %v1011
        %v1063 = vpop.f32.mrf.mxu0
        %v1064 = vadd.f32 0.0, %v1063
        %1065 = vmatmul.f32.gmra.mxu0 %v1014
        %v1066 = vpop.f32.mrf.mxu0
        %v1067 = vadd.f32 0.0, %v1066
        %1068 = vmatmul.f32.gmra.mxu0 %v1017
        %v1069 = vpop.f32.mrf.mxu0
        %v1070 = vadd.f32 0.0, %v1069
        %1071 = vmatmul.f32.gmra.mxu0 %v1020
        %v1072 = vpop.f32.mrf.mxu0
        %v1073 = vadd.f32 0.0, %v1072
        %1074 = vdwg.mxu0
        %v1075 = vadd.f32 %v952, %v1040
        %v1076 = vadd.f32 %v955, %v1043
        %v1077 = vadd.f32 %v952, %v1046
        %v1078 = vadd.f32 %v955, %v1049
        %v1079 = vadd.f32 %v975, %v1052
        %v1080 = vadd.f32 %v978, %v1055
        %v1081 = vadd.f32 %v981, %v1058
        %v1082 = vadd.f32 %v984, %v1061
        %v1083 = vadd.f32 %v975, %v1064
        %v1084 = vadd.f32 %v978, %v1067
        %v1085 = vadd.f32 %v981, %v1070
        %v1086 = vadd.f32 %v984, %v1073
        %v1088 = vperm.slane %v362, 0
        %v1090 = vadd.f32 %v1075, %v1088
        %v1091 = vadd.f32 %v1076, %v1088
        %v1092 = vadd.f32 %v1077, %v1088
        %v1093 = vadd.f32 %v1078, %v1088
        %v1094 = vadd.f32 %v1079, %v1088
        %v1095 = vadd.f32 %v1080, %v1088
        %v1096 = vadd.f32 %v1081, %v1088
        %v1097 = vadd.f32 %v1082, %v1088
        %v1098 = vadd.f32 %v1083, %v1088
        %v1099 = vadd.f32 %v1084, %v1088
        %v1100 = vadd.f32 %v1085, %v1088
        %v1101 = vadd.f32 %v1086, %v1088
        %v1102 = vmul.f32 %v1090, 0.01
        %v1103 = vmul.f32 %v1091, 0.01
        %v1104 = vmul.f32 %v1092, 0.01
        %v1105 = vmul.f32 %v1093, 0.01
        %v1106 = vmul.f32 %v1094, 0.01
        %v1107 = vmul.f32 %v1095, 0.01
        %v1108 = vmul.f32 %v1096, 0.01
        %v1109 = vmul.f32 %v1097, 0.01
        %v1110 = vmul.f32 %v1098, 0.01
        %v1111 = vmul.f32 %v1099, 0.01
        %v1112 = vmul.f32 %v1100, 0.01
        %v1113 = vmul.f32 %v1101, 0.01
        %v1114 = vmax.f32 %v1090, %v1102
        %v1115 = vmax.f32 %v1091, %v1103
        %v1116 = vmax.f32 %v1092, %v1104
        %v1117 = vmax.f32 %v1093, %v1105
        %v1118 = vmax.f32 %v1094, %v1106
        %v1119 = vmax.f32 %v1095, %v1107
        %v1120 = vmax.f32 %v1096, %v1108
        %v1121 = vmax.f32 %v1097, %v1109
        %v1122 = vmax.f32 %v1098, %v1110
        %v1123 = vmax.f32 %v1099, %v1111
        %v1124 = vmax.f32 %v1100, %v1112
        %v1125 = vmax.f32 %v1101, %v1113
        %v1127 = vperm.slane %v364, 0
        %v1130 = vsel %vm420, %v1114, 0
        %v1133 = vsel %vm420, %v1115, 0
        %v1136 = vsel %vm420, %v1116, 0
        %v1139 = vsel %vm420, %v1117, 0
        %v1142 = vsel %vm420, %v1118, 0
        %v1145 = vsel %vm420, %v1119, 0
        %v1148 = vsel %vm420, %v1120, 0
        %v1151 = vsel %vm420, %v1121, 0
        %v1154 = vsel %vm420, %v1122, 0
        %v1157 = vsel %vm420, %v1123, 0
        %v1160 = vsel %vm420, %v1124, 0
        %v1163 = vsel %vm420, %v1125, 0
        %1165 = vmatpush.msra.mxu0 0.0
        %1166 = vmatpush.msra.mxu0 0.0
        %1167 = vmatpush.msra.mxu0 0.0
        %1168 = vmatpush.msra.mxu0 0.0
        %1169 = vmatpush.msra.mxu0 0.0
        %1170 = vmatpush.msra.mxu0 0.0
        %1171 = vmatpush.msra.mxu0 0.0
        %1172 = vmatpush.msra.mxu0 0.0
        %1173 = vmatpush.msra.mxu0 0.0
        %1174 = vmatpush.msra.mxu0 0.0
        %1175 = vmatpush.msra.mxu0 0.0
        %1176 = vmatpush.msra.mxu0 0.0
        %1177 = vmatpush.msra.mxu0 %v352
        %1178 = vmatpush.msra.mxu0 %v351
        %1179 = vmatpush.msra.mxu0 %v350
        %1180 = vmatpush.msra.mxu0 %v349
        %1181 = vmatmul.f32.gmra.mxu0 %v1130
        %v1182 = vpop.f32.mrf.mxu0
        %v1183 = vadd.f32 %v1127, %v1182
        %1184 = vmatmul.f32.gmra.mxu0 %v1133
        %v1185 = vpop.f32.mrf.mxu0
        %v1186 = vadd.f32 %v1127, %v1185
        %1187 = vmatmul.f32.gmra.mxu0 %v1136
        %v1188 = vpop.f32.mrf.mxu0
        %v1189 = vadd.f32 %v1127, %v1188
        %1190 = vmatmul.f32.gmra.mxu0 %v1139
        %v1191 = vpop.f32.mrf.mxu0
        %v1192 = vadd.f32 %v1127, %v1191
        %1193 = vmatmul.f32.gmra.mxu0 %v1142
        %v1194 = vpop.f32.mrf.mxu0
        %v1195 = vadd.f32 %v1127, %v1194
        %1196 = vmatmul.f32.gmra.mxu0 %v1145
        %v1197 = vpop.f32.mrf.mxu0
        %v1198 = vadd.f32 %v1127, %v1197
        %1199 = vmatmul.f32.gmra.mxu0 %v1148
        %v1200 = vpop.f32.mrf.mxu0
        %v1201 = vadd.f32 %v1127, %v1200
        %1202 = vmatmul.f32.gmra.mxu0 %v1151
        %v1203 = vpop.f32.mrf.mxu0
        %v1204 = vadd.f32 %v1127, %v1203
        %1205 = vmatmul.f32.gmra.mxu0 %v1154
        %v1206 = vpop.f32.mrf.mxu0
        %v1207 = vadd.f32 %v1127, %v1206
        %1208 = vmatmul.f32.gmra.mxu0 %v1157
        %v1209 = vpop.f32.mrf.mxu0
        %v1210 = vadd.f32 %v1127, %v1209
        %1211 = vmatmul.f32.gmra.mxu0 %v1160
        %v1212 = vpop.f32.mrf.mxu0
        %v1213 = vadd.f32 %v1127, %v1212
        %1214 = vmatmul.f32.gmra.mxu0 %v1163
        %v1215 = vpop.f32.mrf.mxu0
        %v1216 = vadd.f32 %v1127, %v1215
        %1217 = vdwg.mxu0
        %v1218 = vmul.f32 %v1183, 0.01
        %v1219 = vmul.f32 %v1186, 0.01
        %v1220 = vmul.f32 %v1189, 0.01
        %v1221 = vmul.f32 %v1192, 0.01
        %v1222 = vmul.f32 %v1195, 0.01
        %v1223 = vmul.f32 %v1198, 0.01
        %v1224 = vmul.f32 %v1201, 0.01
        %v1225 = vmul.f32 %v1204, 0.01
        %v1226 = vmul.f32 %v1207, 0.01
        %v1227 = vmul.f32 %v1210, 0.01
        %v1228 = vmul.f32 %v1213, 0.01
        %v1229 = vmul.f32 %v1216, 0.01
        %v1230 = vmax.f32 %v1183, %v1218
        %v1231 = vmax.f32 %v1186, %v1219
        %v1232 = vmax.f32 %v1189, %v1220
        %v1233 = vmax.f32 %v1192, %v1221
        %v1234 = vmax.f32 %v1195, %v1222
        %v1235 = vmax.f32 %v1198, %v1223
        %v1236 = vmax.f32 %v1201, %v1224
        %v1237 = vmax.f32 %v1204, %v1225
        %v1238 = vmax.f32 %v1207, %v1226
        %v1239 = vmax.f32 %v1210, %v1227
        %v1240 = vmax.f32 %v1213, %v1228
        %v1241 = vmax.f32 %v1216, %v1229
        %v1242 = vadd.f32 %v1230, %v1232
        %v1243 = vadd.f32 %v1231, %v1233
        %v1244 = vadd.f32 %v1234, %v1238
        %v1245 = vadd.f32 %v1235, %v1239
        %v1246 = vadd.f32 %v1236, %v1240
        %v1247 = vadd.f32 %v1237, %v1241
        %v1249 = vsel %vm420, %v1244, 0
        %v1252 = vsel %vm420, %v1245, 0
        %v1255 = vsel %vm420, %v1246, 0
        %v1258 = vsel %vm420, %v1247, 0
        %v1261 = vsel %vm420, %v1242, 0
        %v1264 = vsel %vm420, %v1243, 0
        %1266 = vmatpush.msra.mxu0 0.0
        %1267 = vmatpush.msra.mxu0 0.0
        %1268 = vmatpush.msra.mxu0 0.0
        %1269 = vmatpush.msra.mxu0 0.0
        %1270 = vmatpush.msra.mxu0 0.0
        %1271 = vmatpush.msra.mxu0 0.0
        %1272 = vmatpush.msra.mxu0 0.0
        %1273 = vmatpush.msra.mxu0 0.0
        %1274 = vmatpush.msra.mxu0 0.0
        %1275 = vmatpush.msra.mxu0 0.0
        %1276 = vmatpush.msra.mxu0 0.0
        %1277 = vmatpush.msra.mxu0 0.0
        %1278 = vmatpush.msra.mxu0 %v327
        %1279 = vmatpush.msra.mxu0 %v326
        %1280 = vmatpush.msra.mxu0 %v325
        %1281 = vmatpush.msra.mxu0 %v324
        %1282 = vmatmul.f32.gmra.mxu0 %v1249
        %v1283 = vpop.f32.mrf.mxu0
        %v1284 = vadd.f32 0.0, %v1283
        %1285 = vmatmul.f32.gmra.mxu0 %v1252
        %v1286 = vpop.f32.mrf.mxu0
        %v1287 = vadd.f32 0.0, %v1286
        %1288 = vmatmul.f32.gmra.mxu0 %v1255
        %v1289 = vpop.f32.mrf.mxu0
        %v1290 = vadd.f32 0.0, %v1289
        %1291 = vmatmul.f32.gmra.mxu0 %v1258
        %v1292 = vpop.f32.mrf.mxu0
        %v1293 = vadd.f32 0.0, %v1292
        %1294 = vmatmul.f32.gmra.mxu0 %v1261
        %v1295 = vpop.f32.mrf.mxu0
        %v1296 = vadd.f32 0.0, %v1295
        %1297 = vmatmul.f32.gmra.mxu0 %v1264
        %v1298 = vpop.f32.mrf.mxu0
        %v1299 = vadd.f32 0.0, %v1298
        %1300 = vdwg.mxu0
        %1301 = vmatpush.msra.mxu0 0.0
        %1302 = vmatpush.msra.mxu0 0.0
        %1303 = vmatpush.msra.mxu0 0.0
        %1304 = vmatpush.msra.mxu0 0.0
        %1305 = vmatpush.msra.mxu0 0.0
        %1306 = vmatpush.msra.mxu0 0.0
        %1307 = vmatpush.msra.mxu0 0.0
        %1308 = vmatpush.msra.mxu0 0.0
        %1309 = vmatpush.msra.mxu0 0.0
        %1310 = vmatpush.msra.mxu0 0.0
        %1311 = vmatpush.msra.mxu0 %v1299
        %1312 = vmatpush.msra.mxu0 %v1296
        %1313 = vmatpush.msra.mxu0 %v1293
        %1314 = vmatpush.msra.mxu0 %v1290
        %1315 = vmatpush.msra.mxu0 %v1287
        %1316 = vmatpush.msra.mxu0 %v1284
        %1317 = vmatmul.f32.gmra.mxu0 %v589
        %v1318 = vpop.f32.mrf.mxu0
        %v1319 = vadd.f32 %v487, %v1318
        %1320 = vmatmul.f32.gmra.mxu0 %v592
        %v1321 = vpop.f32.mrf.mxu0
        %v1322 = vadd.f32 %v490, %v1321
        %1323 = vmatmul.f32.gmra.mxu0 %v595
        %v1324 = vpop.f32.mrf.mxu0
        %v1325 = vadd.f32 %v493, %v1324
        %1326 = vmatmul.f32.gmra.mxu0 %v598
        %v1327 = vpop.f32.mrf.mxu0
        %v1328 = vadd.f32 %v496, %v1327
        %1329 = vmatmul.f32.gmra.mxu0 %v601
        %v1330 = vpop.f32.mrf.mxu0
        %v1331 = vadd.f32 %v499, %v1330
        %1332 = vmatmul.f32.gmra.mxu0 %v604
        %v1333 = vpop.f32.mrf.mxu0
        %v1334 = vadd.f32 %v502, %v1333
        %1335 = vmatmul.f32.gmra.mxu0 %v607
        %v1336 = vpop.f32.mrf.mxu0
        %v1337 = vadd.f32 %v505, %v1336
        %1338 = vmatmul.f32.gmra.mxu0 %v610
        %v1339 = vpop.f32.mrf.mxu0
        %v1340 = vadd.f32 %v508, %v1339
        %1341 = vmatmul.f32.gmra.mxu0 %v613
        %v1342 = vpop.f32.mrf.mxu0
        %v1343 = vadd.f32 %v511, %v1342
        %1344 = vmatmul.f32.gmra.mxu0 %v616
        %v1345 = vpop.f32.mrf.mxu0
        %v1346 = vadd.f32 %v514, %v1345
        %1347 = vmatmul.f32.gmra.mxu0 %v619
        %v1348 = vpop.f32.mrf.mxu0
        %v1349 = vadd.f32 %v517, %v1348
        %1350 = vmatmul.f32.gmra.mxu0 %v622
        %v1351 = vpop.f32.mrf.mxu0
        %v1352 = vadd.f32 %v520, %v1351
        %1353 = vmatmul.f32.gmra.mxu0 %v625
        %v1354 = vpop.f32.mrf.mxu0
        %v1355 = vadd.f32 %v523, %v1354
        %1356 = vmatmul.f32.gmra.mxu0 %v628
        %v1357 = vpop.f32.mrf.mxu0
        %v1358 = vadd.f32 %v526, %v1357
        %1359 = vmatmul.f32.gmra.mxu0 %v631
        %v1360 = vpop.f32.mrf.mxu0
        %v1361 = vadd.f32 %v529, %v1360
        %1362 = vmatmul.f32.gmra.mxu0 %v634
        %v1363 = vpop.f32.mrf.mxu0
        %v1364 = vadd.f32 %v532, %v1363
        %1365 = vdwg.mxu0
        %v1366 = vmul.f32 %v1319, 0.01
        %v1367 = vmul.f32 %v1322, 0.01
        %v1368 = vmul.f32 %v1325, 0.01
        %v1369 = vmul.f32 %v1328, 0.01
        %v1370 = vmul.f32 %v1331, 0.01
        %v1371 = vmul.f32 %v1334, 0.01
        %v1372 = vmul.f32 %v1337, 0.01
        %v1373 = vmul.f32 %v1340, 0.01
        %v1374 = vmul.f32 %v1343, 0.01
        %v1375 = vmul.f32 %v1346, 0.01
        %v1376 = vmul.f32 %v1349, 0.01
        %v1377 = vmul.f32 %v1352, 0.01
        %v1378 = vmul.f32 %v1355, 0.01
        %v1379 = vmul.f32 %v1358, 0.01
        %v1380 = vmul.f32 %v1361, 0.01
        %v1381 = vmul.f32 %v1364, 0.01
        %v1382 = vmax.f32 %v1319, %v1366
        %v1383 = vmax.f32 %v1322, %v1367
        %v1384 = vmax.f32 %v1325, %v1368
        %v1385 = vmax.f32 %v1328, %v1369
        %v1386 = vmax.f32 %v1331, %v1370
        %v1387 = vmax.f32 %v1334, %v1371
        %v1388 = vmax.f32 %v1337, %v1372
        %v1389 = vmax.f32 %v1340, %v1373
        %v1390 = vmax.f32 %v1343, %v1374
        %v1391 = vmax.f32 %v1346, %v1375
        %v1392 = vmax.f32 %v1349, %v1376
        %v1393 = vmax.f32 %v1352, %v1377
        %v1394 = vmax.f32 %v1355, %v1378
        %v1395 = vmax.f32 %v1358, %v1379
        %v1396 = vmax.f32 %v1361, %v1380
        %v1397 = vmax.f32 %v1364, %v1381
        %v1399 = vsel %vm420, %v1382, 0
        %v1402 = vsel %vm420, %v1383, 0
        %v1405 = vsel %vm420, %v1384, 0
        %v1408 = vsel %vm420, %v1385, 0
        %v1411 = vsel %vm420, %v1386, 0
        %v1414 = vsel %vm420, %v1387, 0
        %v1417 = vsel %vm420, %v1388, 0
        %v1420 = vsel %vm420, %v1389, 0
        %v1423 = vsel %vm420, %v1390, 0
        %v1426 = vsel %vm420, %v1391, 0
        %v1429 = vsel %vm420, %v1392, 0
        %v1432 = vsel %vm420, %v1393, 0
        %v1435 = vsel %vm420, %v1394, 0
        %v1438 = vsel %vm420, %v1395, 0
        %v1441 = vsel %vm420, %v1396, 0
        %v1444 = vsel %vm420, %v1397, 0
        %1446 = vmatpush.msra.mxu0 0.0
        %1447 = vmatpush.msra.mxu0 0.0
        %1448 = vmatpush.msra.mxu0 0.0
        %1449 = vmatpush.msra.mxu0 0.0
        %1450 = vmatpush.msra.mxu0 0.0
        %1451 = vmatpush.msra.mxu0 0.0
        %1452 = vmatpush.msra.mxu0 0.0
        %1453 = vmatpush.msra.mxu0 0.0
        %1454 = vmatpush.msra.mxu0 0.0
        %1455 = vmatpush.msra.mxu0 0.0
        %1456 = vmatpush.msra.mxu0 0.0
        %1457 = vmatpush.msra.mxu0 0.0
        %1458 = vmatpush.msra.mxu0 %v337
        %1459 = vmatpush.msra.mxu0 %v336
        %1460 = vmatpush.msra.mxu0 %v335
        %1461 = vmatpush.msra.mxu0 %v334
        %1462 = vmatmul.f32.gmra.mxu0 %v1399
        %v1463 = vpop.f32.mrf.mxu0
        %v1464 = vadd.f32 %v734, %v1463
        %1465 = vmatmul.f32.gmra.mxu0 %v1402
        %v1466 = vpop.f32.mrf.mxu0
        %v1467 = vadd.f32 %v734, %v1466
        %1468 = vmatmul.f32.gmra.mxu0 %v1405
        %v1469 = vpop.f32.mrf.mxu0
        %v1470 = vadd.f32 %v734, %v1469
        %1471 = vmatmul.f32.gmra.mxu0 %v1408
        %v1472 = vpop.f32.mrf.mxu0
        %v1473 = vadd.f32 %v734, %v1472
        %1474 = vmatmul.f32.gmra.mxu0 %v1411
        %v1475 = vpop.f32.mrf.mxu0
        %v1476 = vadd.f32 %v734, %v1475
        %1477 = vmatmul.f32.gmra.mxu0 %v1414
        %v1478 = vpop.f32.mrf.mxu0
        %v1479 = vadd.f32 %v734, %v1478
        %1480 = vmatmul.f32.gmra.mxu0 %v1417
        %v1481 = vpop.f32.mrf.mxu0
        %v1482 = vadd.f32 %v734, %v1481
        %1483 = vmatmul.f32.gmra.mxu0 %v1420
        %v1484 = vpop.f32.mrf.mxu0
        %v1485 = vadd.f32 %v734, %v1484
        %1486 = vmatmul.f32.gmra.mxu0 %v1423
        %v1487 = vpop.f32.mrf.mxu0
        %v1488 = vadd.f32 %v734, %v1487
        %1489 = vmatmul.f32.gmra.mxu0 %v1426
        %v1490 = vpop.f32.mrf.mxu0
        %v1491 = vadd.f32 %v734, %v1490
        %1492 = vmatmul.f32.gmra.mxu0 %v1429
        %v1493 = vpop.f32.mrf.mxu0
        %v1494 = vadd.f32 %v734, %v1493
        %1495 = vmatmul.f32.gmra.mxu0 %v1432
        %v1496 = vpop.f32.mrf.mxu0
        %v1497 = vadd.f32 %v734, %v1496
        %1498 = vmatmul.f32.gmra.mxu0 %v1435
        %v1499 = vpop.f32.mrf.mxu0
        %v1500 = vadd.f32 %v734, %v1499
        %1501 = vmatmul.f32.gmra.mxu0 %v1438
        %v1502 = vpop.f32.mrf.mxu0
        %v1503 = vadd.f32 %v734, %v1502
        %1504 = vmatmul.f32.gmra.mxu0 %v1441
        %v1505 = vpop.f32.mrf.mxu0
        %v1506 = vadd.f32 %v734, %v1505
        %1507 = vmatmul.f32.gmra.mxu0 %v1444
        %v1508 = vpop.f32.mrf.mxu0
        %v1509 = vadd.f32 %v734, %v1508
        %1510 = vdwg.mxu0
        %v1511 = vmul.f32 %v1464, 0.01
        %v1512 = vmul.f32 %v1467, 0.01
        %v1513 = vmul.f32 %v1470, 0.01
        %v1514 = vmul.f32 %v1473, 0.01
        %v1515 = vmul.f32 %v1476, 0.01
        %v1516 = vmul.f32 %v1479, 0.01
        %v1517 = vmul.f32 %v1482, 0.01
        %v1518 = vmul.f32 %v1485, 0.01
        %v1519 = vmul.f32 %v1488, 0.01
        %v1520 = vmul.f32 %v1491, 0.01
        %v1521 = vmul.f32 %v1494, 0.01
        %v1522 = vmul.f32 %v1497, 0.01
        %v1523 = vmul.f32 %v1500, 0.01
        %v1524 = vmul.f32 %v1503, 0.01
        %v1525 = vmul.f32 %v1506, 0.01
        %v1526 = vmul.f32 %v1509, 0.01
        %v1527 = vmax.f32 %v1464, %v1511
        %v1528 = vmax.f32 %v1467, %v1512
        %v1529 = vmax.f32 %v1470, %v1513
        %v1530 = vmax.f32 %v1473, %v1514
        %v1531 = vmax.f32 %v1476, %v1515
        %v1532 = vmax.f32 %v1479, %v1516
        %v1533 = vmax.f32 %v1482, %v1517
        %v1534 = vmax.f32 %v1485, %v1518
        %v1535 = vmax.f32 %v1488, %v1519
        %v1536 = vmax.f32 %v1491, %v1520
        %v1537 = vmax.f32 %v1494, %v1521
        %v1538 = vmax.f32 %v1497, %v1522
        %v1539 = vmax.f32 %v1500, %v1523
        %v1540 = vmax.f32 %v1503, %v1524
        %v1541 = vmax.f32 %v1506, %v1525
        %v1542 = vmax.f32 %v1509, %v1526
        %1543 = vmatpush.msra.mxu0 %v1542
        %1544 = vmatpush.msra.mxu0 %v1541
        %1545 = vmatpush.msra.mxu0 %v1540
        %1546 = vmatpush.msra.mxu0 %v1539
        %1547 = vmatpush.msra.mxu0 %v1538
        %1548 = vmatpush.msra.mxu0 %v1537
        %1549 = vmatpush.msra.mxu0 %v1536
        %1550 = vmatpush.msra.mxu0 %v1535
        %1551 = vmatpush.msra.mxu0 %v1534
        %1552 = vmatpush.msra.mxu0 %v1533
        %1553 = vmatpush.msra.mxu0 %v1532
        %1554 = vmatpush.msra.mxu0 %v1531
        %1555 = vmatpush.msra.mxu0 %v1530
        %1556 = vmatpush.msra.mxu0 %v1529
        %1557 = vmatpush.msra.mxu0 %v1528
        %1558 = vmatpush.msra.mxu0 %v1527
        %1559 = vmatmul.f32.gmra.mxu0 %v383
        %v1560 = vpop.f32.mrf.mxu0
        %v1561 = vadd.f32 0.0, %v1560
        %1562 = vmatmul.f32.gmra.mxu0 %v384
        %v1563 = vpop.f32.mrf.mxu0
        %v1564 = vadd.f32 0.0, %v1563
        %1565 = vmatmul.f32.gmra.mxu0 %v385
        %v1566 = vpop.f32.mrf.mxu0
        %v1567 = vadd.f32 0.0, %v1566
        %1568 = vmatmul.f32.gmra.mxu0 %v386
        %v1569 = vpop.f32.mrf.mxu0
        %v1570 = vadd.f32 0.0, %v1569
        %1571 = vmatmul.f32.gmra.mxu0 %v387
        %v1572 = vpop.f32.mrf.mxu0
        %v1573 = vadd.f32 0.0, %v1572
        %1574 = vmatmul.f32.gmra.mxu0 %v388
        %v1575 = vpop.f32.mrf.mxu0
        %v1576 = vadd.f32 0.0, %v1575
        %1577 = vmatmul.f32.gmra.mxu0 %v389
        %v1578 = vpop.f32.mrf.mxu0
        %v1579 = vadd.f32 0.0, %v1578
        %1580 = vmatmul.f32.gmra.mxu0 %v390
        %v1581 = vpop.f32.mrf.mxu0
        %v1582 = vadd.f32 0.0, %v1581
        %1583 = vmatmul.f32.gmra.mxu0 %v391
        %v1584 = vpop.f32.mrf.mxu0
        %v1585 = vadd.f32 0.0, %v1584
        %1586 = vmatmul.f32.gmra.mxu0 %v392
        %v1587 = vpop.f32.mrf.mxu0
        %v1588 = vadd.f32 0.0, %v1587
        %1589 = vmatmul.f32.gmra.mxu0 %v393
        %v1590 = vpop.f32.mrf.mxu0
        %v1591 = vadd.f32 0.0, %v1590
        %1592 = vmatmul.f32.gmra.mxu0 %v394
        %v1593 = vpop.f32.mrf.mxu0
        %v1594 = vadd.f32 0.0, %v1593
        %1595 = vdwg.mxu0
        %1596 = vmatpush.msra.mxu0 0.0
        %1597 = vmatpush.msra.mxu0 0.0
        %1598 = vmatpush.msra.mxu0 0.0
        %1599 = vmatpush.msra.mxu0 0.0
        %1600 = vmatpush.msra.mxu0 0.0
        %1601 = vmatpush.msra.mxu0 0.0
        %1602 = vmatpush.msra.mxu0 0.0
        %1603 = vmatpush.msra.mxu0 0.0
        %1604 = vmatpush.msra.mxu0 0.0
        %1605 = vmatpush.msra.mxu0 0.0
        %1606 = vmatpush.msra.mxu0 0.0
        %1607 = vmatpush.msra.mxu0 0.0
        %1608 = vmatpush.msra.mxu0 %v342
        %1609 = vmatpush.msra.mxu0 %v341
        %1610 = vmatpush.msra.mxu0 %v340
        %1611 = vmatpush.msra.mxu0 %v339
        %1612 = vmatmul.f32.gmra.mxu0 %v1261
        %v1613 = vpop.f32.mrf.mxu0
        %v1614 = vadd.f32 0.0, %v1613
        %1615 = vmatmul.f32.gmra.mxu0 %v1264
        %v1616 = vpop.f32.mrf.mxu0
        %v1617 = vadd.f32 0.0, %v1616
        %1618 = vdwg.mxu0
        %1619 = vmatpush.msra.mxu0 0.0
        %1620 = vmatpush.msra.mxu0 0.0
        %1621 = vmatpush.msra.mxu0 0.0
        %1622 = vmatpush.msra.mxu0 0.0
        %1623 = vmatpush.msra.mxu0 0.0
        %1624 = vmatpush.msra.mxu0 0.0
        %1625 = vmatpush.msra.mxu0 0.0
        %1626 = vmatpush.msra.mxu0 0.0
        %1627 = vmatpush.msra.mxu0 0.0
        %1628 = vmatpush.msra.mxu0 0.0
        %1629 = vmatpush.msra.mxu0 0.0
        %1630 = vmatpush.msra.mxu0 0.0
        %1631 = vmatpush.msra.mxu0 %v342
        %1632 = vmatpush.msra.mxu0 %v341
        %1633 = vmatpush.msra.mxu0 %v340
        %1634 = vmatpush.msra.mxu0 %v339
        %1635 = vmatmul.f32.gmra.mxu0 %v1249
        %v1636 = vpop.f32.mrf.mxu0
        %v1637 = vadd.f32 0.0, %v1636
        %1638 = vmatmul.f32.gmra.mxu0 %v1252
        %v1639 = vpop.f32.mrf.mxu0
        %v1640 = vadd.f32 0.0, %v1639
        %1641 = vmatmul.f32.gmra.mxu0 %v1255
        %v1642 = vpop.f32.mrf.mxu0
        %v1643 = vadd.f32 0.0, %v1642
        %1644 = vmatmul.f32.gmra.mxu0 %v1258
        %v1645 = vpop.f32.mrf.mxu0
        %v1646 = vadd.f32 0.0, %v1645
        %1647 = vdwg.mxu0
        %v1649 = vsel %vm420, %v1561, 0
        %v1652 = vsel %vm420, %v1564, 0
        %v1655 = vsel %vm420, %v1567, 0
        %v1658 = vsel %vm420, %v1570, 0
        %v1661 = vsel %vm420, %v1573, 0
        %v1664 = vsel %vm420, %v1576, 0
        %v1667 = vsel %vm420, %v1579, 0
        %v1670 = vsel %vm420, %v1582, 0
        %v1673 = vsel %vm420, %v1585, 0
        %v1676 = vsel %vm420, %v1588, 0
        %v1679 = vsel %vm420, %v1591, 0
        %v1682 = vsel %vm420, %v1594, 0
        %1684 = vmatpush.msra.mxu0 0.0
        %1685 = vmatpush.msra.mxu0 0.0
        %1686 = vmatpush.msra.mxu0 0.0
        %1687 = vmatpush.msra.mxu0 0.0
        %1688 = vmatpush.msra.mxu0 0.0
        %1689 = vmatpush.msra.mxu0 0.0
        %1690 = vmatpush.msra.mxu0 0.0
        %1691 = vmatpush.msra.mxu0 0.0
        %1692 = vmatpush.msra.mxu0 0.0
        %1693 = vmatpush.msra.mxu0 0.0
        %1694 = vmatpush.msra.mxu0 0.0
        %1695 = vmatpush.msra.mxu0 0.0
        %1696 = vmatpush.msra.mxu0 %v347
        %1697 = vmatpush.msra.mxu0 %v346
        %1698 = vmatpush.msra.mxu0 %v345
        %1699 = vmatpush.msra.mxu0 %v344
        %1700 = vmatmul.f32.gmra.mxu0 %v1649
        %v1701 = vpop.f32.mrf.mxu0
        %v1702 = vadd.f32 0.0, %v1701
        %1703 = vmatmul.f32.gmra.mxu0 %v1652
        %v1704 = vpop.f32.mrf.mxu0
        %v1705 = vadd.f32 0.0, %v1704
        %1706 = vmatmul.f32.gmra.mxu0 %v1655
        %v1707 = vpop.f32.mrf.mxu0
        %v1708 = vadd.f32 0.0, %v1707
        %1709 = vmatmul.f32.gmra.mxu0 %v1658
        %v1710 = vpop.f32.mrf.mxu0
        %v1711 = vadd.f32 0.0, %v1710
        %1712 = vmatmul.f32.gmra.mxu0 %v1661
        %v1713 = vpop.f32.mrf.mxu0
        %v1714 = vadd.f32 0.0, %v1713
        %1715 = vmatmul.f32.gmra.mxu0 %v1664
        %v1716 = vpop.f32.mrf.mxu0
        %v1717 = vadd.f32 0.0, %v1716
        %1718 = vmatmul.f32.gmra.mxu0 %v1667
        %v1719 = vpop.f32.mrf.mxu0
        %v1720 = vadd.f32 0.0, %v1719
        %1721 = vmatmul.f32.gmra.mxu0 %v1670
        %v1722 = vpop.f32.mrf.mxu0
        %v1723 = vadd.f32 0.0, %v1722
        %1724 = vmatmul.f32.gmra.mxu0 %v1673
        %v1725 = vpop.f32.mrf.mxu0
        %v1726 = vadd.f32 0.0, %v1725
        %1727 = vmatmul.f32.gmra.mxu0 %v1676
        %v1728 = vpop.f32.mrf.mxu0
        %v1729 = vadd.f32 0.0, %v1728
        %1730 = vmatmul.f32.gmra.mxu0 %v1679
        %v1731 = vpop.f32.mrf.mxu0
        %v1732 = vadd.f32 0.0, %v1731
        %1733 = vmatmul.f32.gmra.mxu0 %v1682
        %v1734 = vpop.f32.mrf.mxu0
        %v1735 = vadd.f32 0.0, %v1734
        %1736 = vdwg.mxu0
        %v1737 = vadd.f32 %v1614, %v1702
        %v1738 = vadd.f32 %v1617, %v1705
        %v1739 = vadd.f32 %v1614, %v1708
        %v1740 = vadd.f32 %v1617, %v1711
        %v1741 = vadd.f32 %v1637, %v1714
        %v1742 = vadd.f32 %v1640, %v1717
        %v1743 = vadd.f32 %v1643, %v1720
        %v1744 = vadd.f32 %v1646, %v1723
        %v1745 = vadd.f32 %v1637, %v1726
        %v1746 = vadd.f32 %v1640, %v1729
        %v1747 = vadd.f32 %v1643, %v1732
        %v1748 = vadd.f32 %v1646, %v1735
        %v1749 = vadd.f32 %v1737, %v1088
        %v1750 = vadd.f32 %v1738, %v1088
        %v1751 = vadd.f32 %v1739, %v1088
        %v1752 = vadd.f32 %v1740, %v1088
        %v1753 = vadd.f32 %v1741, %v1088
        %v1754 = vadd.f32 %v1742, %v1088
        %v1755 = vadd.f32 %v1743, %v1088
        %v1756 = vadd.f32 %v1744, %v1088
        %v1757 = vadd.f32 %v1745, %v1088
        %v1758 = vadd.f32 %v1746, %v1088
        %v1759 = vadd.f32 %v1747, %v1088
        %v1760 = vadd.f32 %v1748, %v1088
        %v1761 = vmul.f32 %v1749, 0.01
        %v1762 = vmul.f32 %v1750, 0.01
        %v1763 = vmul.f32 %v1751, 0.01
        %v1764 = vmul.f32 %v1752, 0.01
        %v1765 = vmul.f32 %v1753, 0.01
        %v1766 = vmul.f32 %v1754, 0.01
        %v1767 = vmul.f32 %v1755, 0.01
        %v1768 = vmul.f32 %v1756, 0.01
        %v1769 = vmul.f32 %v1757, 0.01
        %v1770 = vmul.f32 %v1758, 0.01
        %v1771 = vmul.f32 %v1759, 0.01
        %v1772 = vmul.f32 %v1760, 0.01
        %v1773 = vmax.f32 %v1749, %v1761
        %v1774 = vmax.f32 %v1750, %v1762
        %v1775 = vmax.f32 %v1751, %v1763
        %v1776 = vmax.f32 %v1752, %v1764
        %v1777 = vmax.f32 %v1753, %v1765
        %v1778 = vmax.f32 %v1754, %v1766
        %v1779 = vmax.f32 %v1755, %v1767
        %v1780 = vmax.f32 %v1756, %v1768
        %v1781 = vmax.f32 %v1757, %v1769
        %v1782 = vmax.f32 %v1758, %v1770
        %v1783 = vmax.f32 %v1759, %v1771
        %v1784 = vmax.f32 %v1760, %v1772
        %v1786 = vsel %vm420, %v1773, 0
        %v1789 = vsel %vm420, %v1774, 0
        %v1792 = vsel %vm420, %v1775, 0
        %v1795 = vsel %vm420, %v1776, 0
        %v1798 = vsel %vm420, %v1777, 0
        %v1801 = vsel %vm420, %v1778, 0
        %v1804 = vsel %vm420, %v1779, 0
        %v1807 = vsel %vm420, %v1780, 0
        %v1810 = vsel %vm420, %v1781, 0
        %v1813 = vsel %vm420, %v1782, 0
        %v1816 = vsel %vm420, %v1783, 0
        %v1819 = vsel %vm420, %v1784, 0
        %1821 = vmatpush.msra.mxu0 0.0
        %1822 = vmatpush.msra.mxu0 0.0
        %1823 = vmatpush.msra.mxu0 0.0
        %1824 = vmatpush.msra.mxu0 0.0
        %1825 = vmatpush.msra.mxu0 0.0
        %1826 = vmatpush.msra.mxu0 0.0
        %1827 = vmatpush.msra.mxu0 0.0
        %1828 = vmatpush.msra.mxu0 0.0
        %1829 = vmatpush.msra.mxu0 0.0
        %1830 = vmatpush.msra.mxu0 0.0
        %1831 = vmatpush.msra.mxu0 0.0
        %1832 = vmatpush.msra.mxu0 0.0
        %1833 = vmatpush.msra.mxu0 %v352
        %1834 = vmatpush.msra.mxu0 %v351
        %1835 = vmatpush.msra.mxu0 %v350
        %1836 = vmatpush.msra.mxu0 %v349
        %1837 = vmatmul.f32.gmra.mxu0 %v1786
        %v1838 = vpop.f32.mrf.mxu0
        %v1839 = vadd.f32 %v1127, %v1838
        %1840 = vmatmul.f32.gmra.mxu0 %v1789
        %v1841 = vpop.f32.mrf.mxu0
        %v1842 = vadd.f32 %v1127, %v1841
        %1843 = vmatmul.f32.gmra.mxu0 %v1792
        %v1844 = vpop.f32.mrf.mxu0
        %v1845 = vadd.f32 %v1127, %v1844
        %1846 = vmatmul.f32.gmra.mxu0 %v1795
        %v1847 = vpop.f32.mrf.mxu0
        %v1848 = vadd.f32 %v1127, %v1847
        %1849 = vmatmul.f32.gmra.mxu0 %v1798
        %v1850 = vpop.f32.mrf.mxu0
        %v1851 = vadd.f32 %v1127, %v1850
        %1852 = vmatmul.f32.gmra.mxu0 %v1801
        %v1853 = vpop.f32.mrf.mxu0
        %v1854 = vadd.f32 %v1127, %v1853
        %1855 = vmatmul.f32.gmra.mxu0 %v1804
        %v1856 = vpop.f32.mrf.mxu0
        %v1857 = vadd.f32 %v1127, %v1856
        %1858 = vmatmul.f32.gmra.mxu0 %v1807
        %v1859 = vpop.f32.mrf.mxu0
        %v1860 = vadd.f32 %v1127, %v1859
        %1861 = vmatmul.f32.gmra.mxu0 %v1810
        %v1862 = vpop.f32.mrf.mxu0
        %v1863 = vadd.f32 %v1127, %v1862
        %1864 = vmatmul.f32.gmra.mxu0 %v1813
        %v1865 = vpop.f32.mrf.mxu0
        %v1866 = vadd.f32 %v1127, %v1865
        %1867 = vmatmul.f32.gmra.mxu0 %v1816
        %v1868 = vpop.f32.mrf.mxu0
        %v1869 = vadd.f32 %v1127, %v1868
        %1870 = vmatmul.f32.gmra.mxu0 %v1819
        %v1871 = vpop.f32.mrf.mxu0
        %v1872 = vadd.f32 %v1127, %v1871
        %1873 = vdwg.mxu0
        %v1874 = vmul.f32 %v1839, 0.01
        %v1875 = vmul.f32 %v1842, 0.01
        %v1876 = vmul.f32 %v1845, 0.01
        %v1877 = vmul.f32 %v1848, 0.01
        %v1878 = vmul.f32 %v1851, 0.01
        %v1879 = vmul.f32 %v1854, 0.01
        %v1880 = vmul.f32 %v1857, 0.01
        %v1881 = vmul.f32 %v1860, 0.01
        %v1882 = vmul.f32 %v1863, 0.01
        %v1883 = vmul.f32 %v1866, 0.01
        %v1884 = vmul.f32 %v1869, 0.01
        %v1885 = vmul.f32 %v1872, 0.01
        %v1886 = vmax.f32 %v1839, %v1874
        %v1887 = vmax.f32 %v1842, %v1875
        %v1888 = vmax.f32 %v1845, %v1876
        %v1889 = vmax.f32 %v1848, %v1877
        %v1890 = vmax.f32 %v1851, %v1878
        %v1891 = vmax.f32 %v1854, %v1879
        %v1892 = vmax.f32 %v1857, %v1880
        %v1893 = vmax.f32 %v1860, %v1881
        %v1894 = vmax.f32 %v1863, %v1882
        %v1895 = vmax.f32 %v1866, %v1883
        %v1896 = vmax.f32 %v1869, %v1884
        %v1897 = vmax.f32 %v1872, %v1885
        %v1898 = vadd.f32 %v1886, %v1888
        %v1899 = vadd.f32 %v1887, %v1889
        %v1900 = vadd.f32 %v1890, %v1894
        %v1901 = vadd.f32 %v1891, %v1895
        %v1902 = vadd.f32 %v1892, %v1896
        %v1903 = vadd.f32 %v1893, %v1897
        %v1905 = vsel %vm420, %v1900, 0
        %v1908 = vsel %vm420, %v1901, 0
        %v1911 = vsel %vm420, %v1902, 0
        %v1914 = vsel %vm420, %v1903, 0
        %v1917 = vsel %vm420, %v1898, 0
        %v1920 = vsel %vm420, %v1899, 0
        %1922 = vmatpush.msra.mxu0 0.0
        %1923 = vmatpush.msra.mxu0 0.0
        %1924 = vmatpush.msra.mxu0 0.0
        %1925 = vmatpush.msra.mxu0 0.0
        %1926 = vmatpush.msra.mxu0 0.0
        %1927 = vmatpush.msra.mxu0 0.0
        %1928 = vmatpush.msra.mxu0 0.0
        %1929 = vmatpush.msra.mxu0 0.0
        %1930 = vmatpush.msra.mxu0 0.0
        %1931 = vmatpush.msra.mxu0 0.0
        %1932 = vmatpush.msra.mxu0 0.0
        %1933 = vmatpush.msra.mxu0 0.0
        %1934 = vmatpush.msra.mxu0 %v327
        %1935 = vmatpush.msra.mxu0 %v326
        %1936 = vmatpush.msra.mxu0 %v325
        %1937 = vmatpush.msra.mxu0 %v324
        %1938 = vmatmul.f32.gmra.mxu0 %v1905
        %v1939 = vpop.f32.mrf.mxu0
        %v1940 = vadd.f32 0.0, %v1939
        %1941 = vmatmul.f32.gmra.mxu0 %v1908
        %v1942 = vpop.f32.mrf.mxu0
        %v1943 = vadd.f32 0.0, %v1942
        %1944 = vmatmul.f32.gmra.mxu0 %v1911
        %v1945 = vpop.f32.mrf.mxu0
        %v1946 = vadd.f32 0.0, %v1945
        %1947 = vmatmul.f32.gmra.mxu0 %v1914
        %v1948 = vpop.f32.mrf.mxu0
        %v1949 = vadd.f32 0.0, %v1948
        %1950 = vmatmul.f32.gmra.mxu0 %v1917
        %v1951 = vpop.f32.mrf.mxu0
        %v1952 = vadd.f32 0.0, %v1951
        %1953 = vmatmul.f32.gmra.mxu0 %v1920
        %v1954 = vpop.f32.mrf.mxu0
        %v1955 = vadd.f32 0.0, %v1954
        %1956 = vdwg.mxu0
        %1957 = vmatpush.msra.mxu0 0.0
        %1958 = vmatpush.msra.mxu0 0.0
        %1959 = vmatpush.msra.mxu0 0.0
        %1960 = vmatpush.msra.mxu0 0.0
        %1961 = vmatpush.msra.mxu0 0.0
        %1962 = vmatpush.msra.mxu0 0.0
        %1963 = vmatpush.msra.mxu0 0.0
        %1964 = vmatpush.msra.mxu0 0.0
        %1965 = vmatpush.msra.mxu0 0.0
        %1966 = vmatpush.msra.mxu0 0.0
        %1967 = vmatpush.msra.mxu0 %v1955
        %1968 = vmatpush.msra.mxu0 %v1952
        %1969 = vmatpush.msra.mxu0 %v1949
        %1970 = vmatpush.msra.mxu0 %v1946
        %1971 = vmatpush.msra.mxu0 %v1943
        %1972 = vmatpush.msra.mxu0 %v1940
        %1973 = vmatmul.f32.gmra.mxu0 %v589
        %v1974 = vpop.f32.mrf.mxu0
        %v1975 = vadd.f32 %v487, %v1974
        %1976 = vmatmul.f32.gmra.mxu0 %v592
        %v1977 = vpop.f32.mrf.mxu0
        %v1978 = vadd.f32 %v490, %v1977
        %1979 = vmatmul.f32.gmra.mxu0 %v595
        %v1980 = vpop.f32.mrf.mxu0
        %v1981 = vadd.f32 %v493, %v1980
        %1982 = vmatmul.f32.gmra.mxu0 %v598
        %v1983 = vpop.f32.mrf.mxu0
        %v1984 = vadd.f32 %v496, %v1983
        %1985 = vmatmul.f32.gmra.mxu0 %v601
        %v1986 = vpop.f32.mrf.mxu0
        %v1987 = vadd.f32 %v499, %v1986
        %1988 = vmatmul.f32.gmra.mxu0 %v604
        %v1989 = vpop.f32.mrf.mxu0
        %v1990 = vadd.f32 %v502, %v1989
        %1991 = vmatmul.f32.gmra.mxu0 %v607
        %v1992 = vpop.f32.mrf.mxu0
        %v1993 = vadd.f32 %v505, %v1992
        %1994 = vmatmul.f32.gmra.mxu0 %v610
        %v1995 = vpop.f32.mrf.mxu0
        %v1996 = vadd.f32 %v508, %v1995
        %1997 = vmatmul.f32.gmra.mxu0 %v613
        %v1998 = vpop.f32.mrf.mxu0
        %v1999 = vadd.f32 %v511, %v1998
        %2000 = vmatmul.f32.gmra.mxu0 %v616
        %v2001 = vpop.f32.mrf.mxu0
        %v2002 = vadd.f32 %v514, %v2001
        %2003 = vmatmul.f32.gmra.mxu0 %v619
        %v2004 = vpop.f32.mrf.mxu0
        %v2005 = vadd.f32 %v517, %v2004
        %2006 = vmatmul.f32.gmra.mxu0 %v622
        %v2007 = vpop.f32.mrf.mxu0
        %v2008 = vadd.f32 %v520, %v2007
        %2009 = vmatmul.f32.gmra.mxu0 %v625
        %v2010 = vpop.f32.mrf.mxu0
        %v2011 = vadd.f32 %v523, %v2010
        %2012 = vmatmul.f32.gmra.mxu0 %v628
        %v2013 = vpop.f32.mrf.mxu0
        %v2014 = vadd.f32 %v526, %v2013
        %2015 = vmatmul.f32.gmra.mxu0 %v631
        %v2016 = vpop.f32.mrf.mxu0
        %v2017 = vadd.f32 %v529, %v2016
        %2018 = vmatmul.f32.gmra.mxu0 %v634
        %v2019 = vpop.f32.mrf.mxu0
        %v2020 = vadd.f32 %v532, %v2019
        %2021 = vdwg.mxu0
        %v2022 = vmul.f32 %v1975, 0.01
        %v2023 = vmul.f32 %v1978, 0.01
        %v2024 = vmul.f32 %v1981, 0.01
        %v2025 = vmul.f32 %v1984, 0.01
        %v2026 = vmul.f32 %v1987, 0.01
        %v2027 = vmul.f32 %v1990, 0.01
        %v2028 = vmul.f32 %v1993, 0.01
        %v2029 = vmul.f32 %v1996, 0.01
        %v2030 = vmul.f32 %v1999, 0.01
        %v2031 = vmul.f32 %v2002, 0.01
        %v2032 = vmul.f32 %v2005, 0.01
        %v2033 = vmul.f32 %v2008, 0.01
        %v2034 = vmul.f32 %v2011, 0.01
        %v2035 = vmul.f32 %v2014, 0.01
        %v2036 = vmul.f32 %v2017, 0.01
        %v2037 = vmul.f32 %v2020, 0.01
        %v2038 = vmax.f32 %v1975, %v2022
        %v2039 = vmax.f32 %v1978, %v2023
        %v2040 = vmax.f32 %v1981, %v2024
        %v2041 = vmax.f32 %v1984, %v2025
        %v2042 = vmax.f32 %v1987, %v2026
        %v2043 = vmax.f32 %v1990, %v2027
        %v2044 = vmax.f32 %v1993, %v2028
        %v2045 = vmax.f32 %v1996, %v2029
        %v2046 = vmax.f32 %v1999, %v2030
        %v2047 = vmax.f32 %v2002, %v2031
        %v2048 = vmax.f32 %v2005, %v2032
        %v2049 = vmax.f32 %v2008, %v2033
        %v2050 = vmax.f32 %v2011, %v2034
        %v2051 = vmax.f32 %v2014, %v2035
        %v2052 = vmax.f32 %v2017, %v2036
        %v2053 = vmax.f32 %v2020, %v2037
        %v2055 = vsel %vm420, %v2038, 0
        %v2058 = vsel %vm420, %v2039, 0
        %v2061 = vsel %vm420, %v2040, 0
        %v2064 = vsel %vm420, %v2041, 0
        %v2067 = vsel %vm420, %v2042, 0
        %v2070 = vsel %vm420, %v2043, 0
        %v2073 = vsel %vm420, %v2044, 0
        %v2076 = vsel %vm420, %v2045, 0
        %v2079 = vsel %vm420, %v2046, 0
        %v2082 = vsel %vm420, %v2047, 0
        %v2085 = vsel %vm420, %v2048, 0
        %v2088 = vsel %vm420, %v2049, 0
        %v2091 = vsel %vm420, %v2050, 0
        %v2094 = vsel %vm420, %v2051, 0
        %v2097 = vsel %vm420, %v2052, 0
        %v2100 = vsel %vm420, %v2053, 0
        %2102 = vmatpush.msra.mxu0 0.0
        %2103 = vmatpush.msra.mxu0 0.0
        %2104 = vmatpush.msra.mxu0 0.0
        %2105 = vmatpush.msra.mxu0 0.0
        %2106 = vmatpush.msra.mxu0 0.0
        %2107 = vmatpush.msra.mxu0 0.0
        %2108 = vmatpush.msra.mxu0 0.0
        %2109 = vmatpush.msra.mxu0 0.0
        %2110 = vmatpush.msra.mxu0 0.0
        %2111 = vmatpush.msra.mxu0 0.0
        %2112 = vmatpush.msra.mxu0 0.0
        %2113 = vmatpush.msra.mxu0 0.0
        %2114 = vmatpush.msra.mxu0 %v337
        %2115 = vmatpush.msra.mxu0 %v336
        %2116 = vmatpush.msra.mxu0 %v335
        %2117 = vmatpush.msra.mxu0 %v334
        %2118 = vmatmul.f32.gmra.mxu0 %v2055
        %v2119 = vpop.f32.mrf.mxu0
        %v2120 = vadd.f32 %v734, %v2119
        %2121 = vmatmul.f32.gmra.mxu0 %v2058
        %v2122 = vpop.f32.mrf.mxu0
        %v2123 = vadd.f32 %v734, %v2122
        %2124 = vmatmul.f32.gmra.mxu0 %v2061
        %v2125 = vpop.f32.mrf.mxu0
        %v2126 = vadd.f32 %v734, %v2125
        %2127 = vmatmul.f32.gmra.mxu0 %v2064
        %v2128 = vpop.f32.mrf.mxu0
        %v2129 = vadd.f32 %v734, %v2128
        %2130 = vmatmul.f32.gmra.mxu0 %v2067
        %v2131 = vpop.f32.mrf.mxu0
        %v2132 = vadd.f32 %v734, %v2131
        %2133 = vmatmul.f32.gmra.mxu0 %v2070
        %v2134 = vpop.f32.mrf.mxu0
        %v2135 = vadd.f32 %v734, %v2134
        %2136 = vmatmul.f32.gmra.mxu0 %v2073
        %v2137 = vpop.f32.mrf.mxu0
        %v2138 = vadd.f32 %v734, %v2137
        %2139 = vmatmul.f32.gmra.mxu0 %v2076
        %v2140 = vpop.f32.mrf.mxu0
        %v2141 = vadd.f32 %v734, %v2140
        %2142 = vmatmul.f32.gmra.mxu0 %v2079
        %v2143 = vpop.f32.mrf.mxu0
        %v2144 = vadd.f32 %v734, %v2143
        %2145 = vmatmul.f32.gmra.mxu0 %v2082
        %v2146 = vpop.f32.mrf.mxu0
        %v2147 = vadd.f32 %v734, %v2146
        %2148 = vmatmul.f32.gmra.mxu0 %v2085
        %v2149 = vpop.f32.mrf.mxu0
        %v2150 = vadd.f32 %v734, %v2149
        %2151 = vmatmul.f32.gmra.mxu0 %v2088
        %v2152 = vpop.f32.mrf.mxu0
        %v2153 = vadd.f32 %v734, %v2152
        %2154 = vmatmul.f32.gmra.mxu0 %v2091
        %v2155 = vpop.f32.mrf.mxu0
        %v2156 = vadd.f32 %v734, %v2155
        %2157 = vmatmul.f32.gmra.mxu0 %v2094
        %v2158 = vpop.f32.mrf.mxu0
        %v2159 = vadd.f32 %v734, %v2158
        %2160 = vmatmul.f32.gmra.mxu0 %v2097
        %v2161 = vpop.f32.mrf.mxu0
        %v2162 = vadd.f32 %v734, %v2161
        %2163 = vmatmul.f32.gmra.mxu0 %v2100
        %v2164 = vpop.f32.mrf.mxu0
        %v2165 = vadd.f32 %v734, %v2164
        %2166 = vdwg.mxu0
        %v2167 = vmul.f32 %v2120, 0.01
        %v2168 = vmul.f32 %v2123, 0.01
        %v2169 = vmul.f32 %v2126, 0.01
        %v2170 = vmul.f32 %v2129, 0.01
        %v2171 = vmul.f32 %v2132, 0.01
        %v2172 = vmul.f32 %v2135, 0.01
        %v2173 = vmul.f32 %v2138, 0.01
        %v2174 = vmul.f32 %v2141, 0.01
        %v2175 = vmul.f32 %v2144, 0.01
        %v2176 = vmul.f32 %v2147, 0.01
        %v2177 = vmul.f32 %v2150, 0.01
        %v2178 = vmul.f32 %v2153, 0.01
        %v2179 = vmul.f32 %v2156, 0.01
        %v2180 = vmul.f32 %v2159, 0.01
        %v2181 = vmul.f32 %v2162, 0.01
        %v2182 = vmul.f32 %v2165, 0.01
        %v2183 = vmax.f32 %v2120, %v2167
        %v2184 = vmax.f32 %v2123, %v2168
        %v2185 = vmax.f32 %v2126, %v2169
        %v2186 = vmax.f32 %v2129, %v2170
        %v2187 = vmax.f32 %v2132, %v2171
        %v2188 = vmax.f32 %v2135, %v2172
        %v2189 = vmax.f32 %v2138, %v2173
        %v2190 = vmax.f32 %v2141, %v2174
        %v2191 = vmax.f32 %v2144, %v2175
        %v2192 = vmax.f32 %v2147, %v2176
        %v2193 = vmax.f32 %v2150, %v2177
        %v2194 = vmax.f32 %v2153, %v2178
        %v2195 = vmax.f32 %v2156, %v2179
        %v2196 = vmax.f32 %v2159, %v2180
        %v2197 = vmax.f32 %v2162, %v2181
        %v2198 = vmax.f32 %v2165, %v2182
        %2199 = vmatpush.msra.mxu0 %v2198
        %2200 = vmatpush.msra.mxu0 %v2197
        %2201 = vmatpush.msra.mxu0 %v2196
        %2202 = vmatpush.msra.mxu0 %v2195
        %2203 = vmatpush.msra.mxu0 %v2194
        %2204 = vmatpush.msra.mxu0 %v2193
        %2205 = vmatpush.msra.mxu0 %v2192
        %2206 = vmatpush.msra.mxu0 %v2191
        %2207 = vmatpush.msra.mxu0 %v2190
        %2208 = vmatpush.msra.mxu0 %v2189
        %2209 = vmatpush.msra.mxu0 %v2188
        %2210 = vmatpush.msra.mxu0 %v2187
        %2211 = vmatpush.msra.mxu0 %v2186
        %2212 = vmatpush.msra.mxu0 %v2185
        %2213 = vmatpush.msra.mxu0 %v2184
        %2214 = vmatpush.msra.mxu0 %v2183
        %2215 = vmatmul.f32.gmra.mxu0 %v383
        %v2216 = vpop.f32.mrf.mxu0
        %v2217 = vadd.f32 0.0, %v2216
        %2218 = vmatmul.f32.gmra.mxu0 %v384
        %v2219 = vpop.f32.mrf.mxu0
        %v2220 = vadd.f32 0.0, %v2219
        %2221 = vmatmul.f32.gmra.mxu0 %v385
        %v2222 = vpop.f32.mrf.mxu0
        %v2223 = vadd.f32 0.0, %v2222
        %2224 = vmatmul.f32.gmra.mxu0 %v386
        %v2225 = vpop.f32.mrf.mxu0
        %v2226 = vadd.f32 0.0, %v2225
        %2227 = vmatmul.f32.gmra.mxu0 %v387
        %v2228 = vpop.f32.mrf.mxu0
        %v2229 = vadd.f32 0.0, %v2228
        %2230 = vmatmul.f32.gmra.mxu0 %v388
        %v2231 = vpop.f32.mrf.mxu0
        %v2232 = vadd.f32 0.0, %v2231
        %2233 = vmatmul.f32.gmra.mxu0 %v389
        %v2234 = vpop.f32.mrf.mxu0
        %v2235 = vadd.f32 0.0, %v2234
        %2236 = vmatmul.f32.gmra.mxu0 %v390
        %v2237 = vpop.f32.mrf.mxu0
        %v2238 = vadd.f32 0.0, %v2237
        %2239 = vmatmul.f32.gmra.mxu0 %v391
        %v2240 = vpop.f32.mrf.mxu0
        %v2241 = vadd.f32 0.0, %v2240
        %2242 = vmatmul.f32.gmra.mxu0 %v392
        %v2243 = vpop.f32.mrf.mxu0
        %v2244 = vadd.f32 0.0, %v2243
        %2245 = vmatmul.f32.gmra.mxu0 %v393
        %v2246 = vpop.f32.mrf.mxu0
        %v2247 = vadd.f32 0.0, %v2246
        %2248 = vmatmul.f32.gmra.mxu0 %v394
        %v2249 = vpop.f32.mrf.mxu0
        %v2250 = vadd.f32 0.0, %v2249
        %2251 = vdwg.mxu0
        %2252 = vmatpush.msra.mxu0 0.0
        %2253 = vmatpush.msra.mxu0 0.0
        %2254 = vmatpush.msra.mxu0 0.0
        %2255 = vmatpush.msra.mxu0 0.0
        %2256 = vmatpush.msra.mxu0 0.0
        %2257 = vmatpush.msra.mxu0 0.0
        %2258 = vmatpush.msra.mxu0 0.0
        %2259 = vmatpush.msra.mxu0 0.0
        %2260 = vmatpush.msra.mxu0 0.0
        %2261 = vmatpush.msra.mxu0 0.0
        %2262 = vmatpush.msra.mxu0 0.0
        %2263 = vmatpush.msra.mxu0 0.0
        %2264 = vmatpush.msra.mxu0 %v342
        %2265 = vmatpush.msra.mxu0 %v341
        %2266 = vmatpush.msra.mxu0 %v340
        %2267 = vmatpush.msra.mxu0 %v339
        %2268 = vmatmul.f32.gmra.mxu0 %v1917
        %v2269 = vpop.f32.mrf.mxu0
        %v2270 = vadd.f32 0.0, %v2269
        %2271 = vmatmul.f32.gmra.mxu0 %v1920
        %v2272 = vpop.f32.mrf.mxu0
        %v2273 = vadd.f32 0.0, %v2272
        %2274 = vdwg.mxu0
        %2275 = vmatpush.msra.mxu0 0.0
        %2276 = vmatpush.msra.mxu0 0.0
        %2277 = vmatpush.msra.mxu0 0.0
        %2278 = vmatpush.msra.mxu0 0.0
        %2279 = vmatpush.msra.mxu0 0.0
        %2280 = vmatpush.msra.mxu0 0.0
        %2281 = vmatpush.msra.mxu0 0.0
        %2282 = vmatpush.msra.mxu0 0.0
        %2283 = vmatpush.msra.mxu0 0.0
        %2284 = vmatpush.msra.mxu0 0.0
        %2285 = vmatpush.msra.mxu0 0.0
        %2286 = vmatpush.msra.mxu0 0.0
        %2287 = vmatpush.msra.mxu0 %v342
        %2288 = vmatpush.msra.mxu0 %v341
        %2289 = vmatpush.msra.mxu0 %v340
        %2290 = vmatpush.msra.mxu0 %v339
        %2291 = vmatmul.f32.gmra.mxu0 %v1905
        %v2292 = vpop.f32.mrf.mxu0
        %v2293 = vadd.f32 0.0, %v2292
        %2294 = vmatmul.f32.gmra.mxu0 %v1908
        %v2295 = vpop.f32.mrf.mxu0
        %v2296 = vadd.f32 0.0, %v2295
        %2297 = vmatmul.f32.gmra.mxu0 %v1911
        %v2298 = vpop.f32.mrf.mxu0
        %v2299 = vadd.f32 0.0, %v2298
        %2300 = vmatmul.f32.gmra.mxu0 %v1914
        %v2301 = vpop.f32.mrf.mxu0
        %v2302 = vadd.f32 0.0, %v2301
        %2303 = vdwg.mxu0
        %v2305 = vsel %vm420, %v2217, 0
        %v2308 = vsel %vm420, %v2220, 0
        %v2311 = vsel %vm420, %v2223, 0
        %v2314 = vsel %vm420, %v2226, 0
        %v2317 = vsel %vm420, %v2229, 0
        %v2320 = vsel %vm420, %v2232, 0
        %v2323 = vsel %vm420, %v2235, 0
        %v2326 = vsel %vm420, %v2238, 0
        %v2329 = vsel %vm420, %v2241, 0
        %v2332 = vsel %vm420, %v2244, 0
        %v2335 = vsel %vm420, %v2247, 0
        %v2338 = vsel %vm420, %v2250, 0
        %2340 = vmatpush.msra.mxu0 0.0
        %2341 = vmatpush.msra.mxu0 0.0
        %2342 = vmatpush.msra.mxu0 0.0
        %2343 = vmatpush.msra.mxu0 0.0
        %2344 = vmatpush.msra.mxu0 0.0
        %2345 = vmatpush.msra.mxu0 0.0
        %2346 = vmatpush.msra.mxu0 0.0
        %2347 = vmatpush.msra.mxu0 0.0
        %2348 = vmatpush.msra.mxu0 0.0
        %2349 = vmatpush.msra.mxu0 0.0
        %2350 = vmatpush.msra.mxu0 0.0
        %2351 = vmatpush.msra.mxu0 0.0
        %2352 = vmatpush.msra.mxu0 %v347
        %2353 = vmatpush.msra.mxu0 %v346
        %2354 = vmatpush.msra.mxu0 %v345
        %2355 = vmatpush.msra.mxu0 %v344
        %2356 = vmatmul.f32.gmra.mxu0 %v2305
        %v2357 = vpop.f32.mrf.mxu0
        %v2358 = vadd.f32 0.0, %v2357
        %2359 = vmatmul.f32.gmra.mxu0 %v2308
        %v2360 = vpop.f32.mrf.mxu0
        %v2361 = vadd.f32 0.0, %v2360
        %2362 = vmatmul.f32.gmra.mxu0 %v2311
        %v2363 = vpop.f32.mrf.mxu0
        %v2364 = vadd.f32 0.0, %v2363
        %2365 = vmatmul.f32.gmra.mxu0 %v2314
        %v2366 = vpop.f32.mrf.mxu0
        %v2367 = vadd.f32 0.0, %v2366
        %2368 = vmatmul.f32.gmra.mxu0 %v2317
        %v2369 = vpop.f32.mrf.mxu0
        %v2370 = vadd.f32 0.0, %v2369
        %2371 = vmatmul.f32.gmra.mxu0 %v2320
        %v2372 = vpop.f32.mrf.mxu0
        %v2373 = vadd.f32 0.0, %v2372
        %2374 = vmatmul.f32.gmra.mxu0 %v2323
        %v2375 = vpop.f32.mrf.mxu0
        %v2376 = vadd.f32 0.0, %v2375
        %2377 = vmatmul.f32.gmra.mxu0 %v2326
        %v2378 = vpop.f32.mrf.mxu0
        %v2379 = vadd.f32 0.0, %v2378
        %2380 = vmatmul.f32.gmra.mxu0 %v2329
        %v2381 = vpop.f32.mrf.mxu0
        %v2382 = vadd.f32 0.0, %v2381
        %2383 = vmatmul.f32.gmra.mxu0 %v2332
        %v2384 = vpop.f32.mrf.mxu0
        %v2385 = vadd.f32 0.0, %v2384
        %2386 = vmatmul.f32.gmra.mxu0 %v2335
        %v2387 = vpop.f32.mrf.mxu0
        %v2388 = vadd.f32 0.0, %v2387
        %2389 = vmatmul.f32.gmra.mxu0 %v2338
        %v2390 = vpop.f32.mrf.mxu0
        %v2391 = vadd.f32 0.0, %v2390
        %2392 = vdwg.mxu0
        %v2393 = vadd.f32 %v2270, %v2358
        %v2394 = vadd.f32 %v2273, %v2361
        %v2395 = vadd.f32 %v2270, %v2364
        %v2396 = vadd.f32 %v2273, %v2367
        %v2397 = vadd.f32 %v2293, %v2370
        %v2398 = vadd.f32 %v2296, %v2373
        %v2399 = vadd.f32 %v2299, %v2376
        %v2400 = vadd.f32 %v2302, %v2379
        %v2401 = vadd.f32 %v2293, %v2382
        %v2402 = vadd.f32 %v2296, %v2385
        %v2403 = vadd.f32 %v2299, %v2388
        %v2404 = vadd.f32 %v2302, %v2391
        %v2405 = vadd.f32 %v2393, %v1088
        %v2406 = vadd.f32 %v2394, %v1088
        %v2407 = vadd.f32 %v2395, %v1088
        %v2408 = vadd.f32 %v2396, %v1088
        %v2409 = vadd.f32 %v2397, %v1088
        %v2410 = vadd.f32 %v2398, %v1088
        %v2411 = vadd.f32 %v2399, %v1088
        %v2412 = vadd.f32 %v2400, %v1088
        %v2413 = vadd.f32 %v2401, %v1088
        %v2414 = vadd.f32 %v2402, %v1088
        %v2415 = vadd.f32 %v2403, %v1088
        %v2416 = vadd.f32 %v2404, %v1088
        %v2417 = vmul.f32 %v2405, 0.01
        %v2418 = vmul.f32 %v2406, 0.01
        %v2419 = vmul.f32 %v2407, 0.01
        %v2420 = vmul.f32 %v2408, 0.01
        %v2421 = vmul.f32 %v2409, 0.01
        %v2422 = vmul.f32 %v2410, 0.01
        %v2423 = vmul.f32 %v2411, 0.01
        %v2424 = vmul.f32 %v2412, 0.01
        %v2425 = vmul.f32 %v2413, 0.01
        %v2426 = vmul.f32 %v2414, 0.01
        %v2427 = vmul.f32 %v2415, 0.01
        %v2428 = vmul.f32 %v2416, 0.01
        %v2429 = vmax.f32 %v2405, %v2417
        %v2430 = vmax.f32 %v2406, %v2418
        %v2431 = vmax.f32 %v2407, %v2419
        %v2432 = vmax.f32 %v2408, %v2420
        %v2433 = vmax.f32 %v2409, %v2421
        %v2434 = vmax.f32 %v2410, %v2422
        %v2435 = vmax.f32 %v2411, %v2423
        %v2436 = vmax.f32 %v2412, %v2424
        %v2437 = vmax.f32 %v2413, %v2425
        %v2438 = vmax.f32 %v2414, %v2426
        %v2439 = vmax.f32 %v2415, %v2427
        %v2440 = vmax.f32 %v2416, %v2428
        %v2442 = vsel %vm420, %v2429, 0
        %v2445 = vsel %vm420, %v2430, 0
        %v2448 = vsel %vm420, %v2431, 0
        %v2451 = vsel %vm420, %v2432, 0
        %v2454 = vsel %vm420, %v2433, 0
        %v2457 = vsel %vm420, %v2434, 0
        %v2460 = vsel %vm420, %v2435, 0
        %v2463 = vsel %vm420, %v2436, 0
        %v2466 = vsel %vm420, %v2437, 0
        %v2469 = vsel %vm420, %v2438, 0
        %v2472 = vsel %vm420, %v2439, 0
        %v2475 = vsel %vm420, %v2440, 0
        %2477 = vmatpush.msra.mxu0 0.0
        %2478 = vmatpush.msra.mxu0 0.0
        %2479 = vmatpush.msra.mxu0 0.0
        %2480 = vmatpush.msra.mxu0 0.0
        %2481 = vmatpush.msra.mxu0 0.0
        %2482 = vmatpush.msra.mxu0 0.0
        %2483 = vmatpush.msra.mxu0 0.0
        %2484 = vmatpush.msra.mxu0 0.0
        %2485 = vmatpush.msra.mxu0 0.0
        %2486 = vmatpush.msra.mxu0 0.0
        %2487 = vmatpush.msra.mxu0 0.0
        %2488 = vmatpush.msra.mxu0 0.0
        %2489 = vmatpush.msra.mxu0 %v352
        %2490 = vmatpush.msra.mxu0 %v351
        %2491 = vmatpush.msra.mxu0 %v350
        %2492 = vmatpush.msra.mxu0 %v349
        %2493 = vmatmul.f32.gmra.mxu0 %v2442
        %v2494 = vpop.f32.mrf.mxu0
        %2495 = vmatmul.f32.gmra.mxu0 %v2445
        %v2496 = vpop.f32.mrf.mxu0
        %2497 = vmatmul.f32.gmra.mxu0 %v2448
        %v2498 = vpop.f32.mrf.mxu0
        %2499 = vmatmul.f32.gmra.mxu0 %v2451
        %v2500 = vpop.f32.mrf.mxu0
        %2501 = vmatmul.f32.gmra.mxu0 %v2454
        %v2502 = vpop.f32.mrf.mxu0
        %v2503 = vadd.f32 %v1127, %v2502
        %2504 = vmatmul.f32.gmra.mxu0 %v2457
        %v2505 = vpop.f32.mrf.mxu0
        %v2506 = vadd.f32 %v1127, %v2505
        %2507 = vmatmul.f32.gmra.mxu0 %v2460
        %v2508 = vpop.f32.mrf.mxu0
        %v2509 = vadd.f32 %v1127, %v2508
        %2510 = vmatmul.f32.gmra.mxu0 %v2463
        %v2511 = vpop.f32.mrf.mxu0
        %v2512 = vadd.f32 %v1127, %v2511
        %2513 = vmatmul.f32.gmra.mxu0 %v2466
        %v2514 = vpop.f32.mrf.mxu0
        %v2515 = vadd.f32 %v1127, %v2514
        %2516 = vmatmul.f32.gmra.mxu0 %v2469
        %v2517 = vpop.f32.mrf.mxu0
        %v2518 = vadd.f32 %v1127, %v2517
        %2519 = vmatmul.f32.gmra.mxu0 %v2472
        %v2520 = vpop.f32.mrf.mxu0
        %v2521 = vadd.f32 %v1127, %v2520
        %2522 = vmatmul.f32.gmra.mxu0 %v2475
        %v2523 = vpop.f32.mrf.mxu0
        %v2524 = vadd.f32 %v1127, %v2523
        %2525 = vdwg.mxu0
        %v2526 = vmul.f32 %v2503, 0.01
        %v2527 = vmul.f32 %v2506, 0.01
        %v2528 = vmul.f32 %v2509, 0.01
        %v2529 = vmul.f32 %v2512, 0.01
        %v2530 = vmul.f32 %v2515, 0.01
        %v2531 = vmul.f32 %v2518, 0.01
        %v2532 = vmul.f32 %v2521, 0.01
        %v2533 = vmul.f32 %v2524, 0.01
        %v2534 = vmax.f32 %v2503, %v2526
        %v2535 = vmax.f32 %v2506, %v2527
        %v2536 = vmax.f32 %v2509, %v2528
        %v2537 = vmax.f32 %v2512, %v2529
        %v2538 = vmax.f32 %v2515, %v2530
        %v2539 = vmax.f32 %v2518, %v2531
        %v2540 = vmax.f32 %v2521, %v2532
        %v2541 = vmax.f32 %v2524, %v2533
        %v2542 = vadd.f32 %v2534, %v2538
        %v2543 = vadd.f32 %v2535, %v2539
        %v2544 = vadd.f32 %v2536, %v2540
        %v2545 = vadd.f32 %v2537, %v2541
        %v2546 = vld [vmem:[%s4] sm:$0xff]
        %v2547 = vld [vmem:[%s4 + $0x8] sm:$0xff]
        %v2548 = vld [vmem:[%s4 + $0x10] sm:$0xff]
        %v2549 = vld [vmem:[%s4 + $0x18] sm:$0xff]
        %v2551 = vsel %vm420, %v2546, 0
        %v2554 = vsel %vm420, %v2547, 0
        %v2557 = vsel %vm420, %v2548, 0
        %v2560 = vsel %vm420, %v2549, 0
        %2562 = vmatpush.msra.mxu0 0.0
        %2563 = vmatpush.msra.mxu0 0.0
        %2564 = vmatpush.msra.mxu0 0.0
        %2565 = vmatpush.msra.mxu0 0.0
        %2566 = vmatpush.msra.mxu0 0.0
        %2567 = vmatpush.msra.mxu0 0.0
        %2568 = vmatpush.msra.mxu0 0.0
        %2569 = vmatpush.msra.mxu0 0.0
        %2570 = vmatpush.msra.mxu0 0.0
        %2571 = vmatpush.msra.mxu0 0.0
        %2572 = vmatpush.msra.mxu0 0.0
        %2573 = vmatpush.msra.mxu0 0.0
        %2574 = vmatpush.msra.mxu0 %v2545
        %2575 = vmatpush.msra.mxu0 %v2544
        %2576 = vmatpush.msra.mxu0 %v2543
        %2577 = vmatpush.msra.mxu0 %v2542
        %2578 = vmatmul.f32.gmra.mxu0 %v2551
        %v2579 = vpop.f32.mrf.mxu0
        %v2580 = vadd.f32 0.0, %v2579
        %2581 = vmatmul.f32.gmra.mxu0 %v2554
        %v2582 = vpop.f32.mrf.mxu0
        %v2583 = vadd.f32 0.0, %v2582
        %2584 = vmatmul.f32.gmra.mxu0 %v2557
        %v2585 = vpop.f32.mrf.mxu0
        %v2586 = vadd.f32 0.0, %v2585
        %2587 = vmatmul.f32.gmra.mxu0 %v2560
        %v2588 = vpop.f32.mrf.mxu0
        %v2589 = vadd.f32 0.0, %v2588
        %2590 = vdwg.mxu0
        %v2592 = vperm.slane %v366, 0
        %v2595 = vsel %vm420, %v2580, 0
        %v2598 = vsel %vm420, %v2583, 0
        %v2601 = vsel %vm420, %v2586, 0
        %v2604 = vsel %vm420, %v2589, 0
        %2606 = vmatpush.msra.mxu0 0.0
        %2607 = vmatpush.msra.mxu0 0.0
        %2608 = vmatpush.msra.mxu0 0.0
        %2609 = vmatpush.msra.mxu0 0.0
        %2610 = vmatpush.msra.mxu0 0.0
        %2611 = vmatpush.msra.mxu0 0.0
        %2612 = vmatpush.msra.mxu0 0.0
        %2613 = vmatpush.msra.mxu0 0.0
        %2614 = vmatpush.msra.mxu0 0.0
        %2615 = vmatpush.msra.mxu0 0.0
        %2616 = vmatpush.msra.mxu0 0.0
        %2617 = vmatpush.msra.mxu0 0.0
        %2618 = vmatpush.msra.mxu0 %v357
        %2619 = vmatpush.msra.mxu0 %v356
        %2620 = vmatpush.msra.mxu0 %v355
        %2621 = vmatpush.msra.mxu0 %v354
        %2622 = vmatmul.f32.gmra.mxu0 %v2595
        %v2623 = vpop.f32.mrf.mxu0
        %v2624 = vadd.f32 %v2592, %v2623
        %2625 = vmatmul.f32.gmra.mxu0 %v2598
        %v2626 = vpop.f32.mrf.mxu0
        %v2627 = vadd.f32 %v2592, %v2626
        %2628 = vmatmul.f32.gmra.mxu0 %v2601
        %v2629 = vpop.f32.mrf.mxu0
        %v2630 = vadd.f32 %v2592, %v2629
        %2631 = vmatmul.f32.gmra.mxu0 %v2604
        %v2632 = vpop.f32.mrf.mxu0
        %v2633 = vadd.f32 %v2592, %v2632
        %2634 = vdwg.mxu0
        %v2635 = vtanh.pop %v2624
        %v2636 = vtanh.pop %v2627
        %v2637 = vtanh.pop %v2630
        %v2638 = vtanh.pop %v2633
        %v2639 = vld [vmem:[%s5] sm:$0xff]
        %v2640 = vld [vmem:[%s5 + $0x8] sm:$0xff]
        %v2641 = vld [vmem:[%s5 + $0x10] sm:$0xff]
        %v2642 = vld [vmem:[%s5 + $0x18] sm:$0xff]
        %v2643 = vmul.f32 %v2635, %v2635
        %v2644 = vmul.f32 %v2636, %v2636
        %v2645 = vmul.f32 %v2637, %v2637
        %v2646 = vmul.f32 %v2638, %v2638
        %v2648 = vsel %vm420, %v2639, 0
        %v2651 = vsel %vm420, %v2640, 0
        %v2654 = vsel %vm420, %v2641, 0
        %v2657 = vsel %vm420, %v2642, 0
        %2659 = vmatpush.msra.mxu0 0.0
        %2660 = vmatpush.msra.mxu0 0.0
        %2661 = vmatpush.msra.mxu0 0.0
        %2662 = vmatpush.msra.mxu0 0.0
        %2663 = vmatpush.msra.mxu0 0.0
        %2664 = vmatpush.msra.mxu0 0.0
        %2665 = vmatpush.msra.mxu0 0.0
        %2666 = vmatpush.msra.mxu0 0.0
        %2667 = vmatpush.msra.mxu0 0.0
        %2668 = vmatpush.msra.mxu0 0.0
        %2669 = vmatpush.msra.mxu0 0.0
        %2670 = vmatpush.msra.mxu0 0.0
        %2671 = vmatpush.msra.mxu0 %v2646
        %2672 = vmatpush.msra.mxu0 %v2645
        %2673 = vmatpush.msra.mxu0 %v2644
        %2674 = vmatpush.msra.mxu0 %v2643
        %2675 = vmatmul.f32.gmra.mxu0 %v2648
        %v2676 = vpop.f32.mrf.mxu0
        %v2677 = vadd.f32 0.0, %v2676
        %2678 = vmatmul.f32.gmra.mxu0 %v2651
        %v2679 = vpop.f32.mrf.mxu0
        %v2680 = vadd.f32 0.0, %v2679
        %2681 = vmatmul.f32.gmra.mxu0 %v2654
        %v2682 = vpop.f32.mrf.mxu0
        %v2683 = vadd.f32 0.0, %v2682
        %2684 = vmatmul.f32.gmra.mxu0 %v2657
        %v2685 = vpop.f32.mrf.mxu0
        %v2686 = vadd.f32 0.0, %v2685
        %2687 = vdwg.mxu0
        %v2688 = vsel %vm420, %v2677, 0.0
        %2689 = vadd.xlane.f32.xlu0 %v2688
        %v2690 = vpop.xlane.xlu0 %2689
        %v2691 = vsel %vm420, %v2680, 0.0
        %2692 = vadd.xlane.f32.xlu0 %v2691
        %v2693 = vpop.xlane.xlu0 %2692
        %v2694 = vsel %vm420, %v2683, 0.0
        %2695 = vadd.xlane.f32.xlu0 %v2694
        %v2696 = vpop.xlane.xlu0 %2695
        %v2697 = vsel %vm420, %v2686, 0.0
        %2698 = vadd.xlane.f32.xlu0 %v2697
        %v2699 = vpop.xlane.xlu0 %2698
        %v2700 = vmax.f32 %v2690, 1.0
        %v2701 = vmax.f32 %v2693, 1.0
        %v2702 = vmax.f32 %v2696, 1.0
        %v2703 = vmax.f32 %v2699, 1.0
        %v2704 = vrsqrt.pop %v2700
        %v2705 = vmul.f32 %v2704, %v2700
        %v2706 = vmul.f32 %v2705, %v2704
        %v2707 = vmul.f32 0.5, %v2706
        %v2708 = vsub.f32 1.5, %v2707
        %v2709 = vmul.f32 %v2704, %v2708
        %vm2710 = vweird.f32 %v2700
        %vm2711 = vweird.f32 %v2704
        %vm2712 = vmor %vm2710, %vm2711
        %v2713 = vsel %vm2712, %v2704, %v2709
        %v2714 = vrsqrt.pop %v2701
        %v2715 = vmul.f32 %v2714, %v2701
        %v2716 = vmul.f32 %v2715, %v2714
        %v2717 = vmul.f32 0.5, %v2716
        %v2718 = vsub.f32 1.5, %v2717
        %v2719 = vmul.f32 %v2714, %v2718
        %vm2720 = vweird.f32 %v2701
        %vm2721 = vweird.f32 %v2714
        %vm2722 = vmor %vm2720, %vm2721
        %v2723 = vsel %vm2722, %v2714, %v2719
        %v2724 = vrsqrt.pop %v2702
        %v2725 = vmul.f32 %v2724, %v2702
        %v2726 = vmul.f32 %v2725, %v2724
        %v2727 = vmul.f32 0.5, %v2726
        %v2728 = vsub.f32 1.5, %v2727
        %v2729 = vmul.f32 %v2724, %v2728
        %vm2730 = vweird.f32 %v2702
        %vm2731 = vweird.f32 %v2724
        %vm2732 = vmor %vm2730, %vm2731
        %v2733 = vsel %vm2732, %v2724, %v2729
        %v2734 = vrsqrt.pop %v2703
        %v2735 = vmul.f32 %v2734, %v2703
        %v2736 = vmul.f32 %v2735, %v2734
        %v2737 = vmul.f32 0.5, %v2736
        %v2738 = vsub.f32 1.5, %v2737
        %v2739 = vmul.f32 %v2734, %v2738
        %vm2740 = vweird.f32 %v2703
        %vm2741 = vweird.f32 %v2734
        %vm2742 = vmor %vm2740, %vm2741
        %v2743 = vsel %vm2742, %v2734, %v2739
        %v2744 = vmul.f32 %v2635, %v2713
        %v2745 = vmul.f32 %v2636, %v2723
        %v2746 = vmul.f32 %v2637, %v2733
        %v2747 = vmul.f32 %v2638, %v2743
        %2748 = vst.msk [vmem:[%s313] sm:$0xff] %vm420, %v2744
        %2749 = vst.msk [vmem:[%s313 + $0x8] sm:$0xff] %vm420, %v2745
        %2750 = vst.msk [vmem:[%s313 + $0x10] sm:$0xff] %vm420, %v2746
        %2751 = vst.msk [vmem:[%s313 + $0x18] sm:$0xff] %vm420, %v2747
        %s2752 = sand.u32 %s208, 1
        %s2753 = scalar_lea.sflag [#allocation3], %s2752
        %s2754 = sand.u32 %s208, 1
        %s2755 = smul.addr %s2754, 32
        %s2756 = scalar_lea.vmem [#allocation2], %s2755
        // Predicated region
        $region53: #{tpu_custom_call.1} parent=51 // pred_check
          %p2757 = pneg %p218
        $region54: #{tpu_custom_call.1} parent=51 // pred_check_branch
          %2759 = sbr.rel (%p2757) target = $region56
        $region55: #{tpu_custom_call.1} parent=51 // pred_region
          %2761 = vsyncadd %s2753, 0
          %s2762 = smul.addr %s22, 4
          %s2763 = smul.addr %s2762, 8
          %s2764 = scalar_lea.hbm %s8, %s2763
          %s2765 = sshll.u32 %s2756, 4
          %s2766 = int_to_ptr.vmem [resolvable:$true] %s2765
          %s2767 = sshll.u32 %s2764, 4
          %s2768 = int_to_ptr.hbm [resolvable:$true] %s2767
          %2773 = dma.vmem_to_hbm [thread:$0]  %s2766, 512, %s2768, %s2753, 128, 128, 8
        $region56: #{tpu_custom_call.1} parent=51 // pred_fallthru
          _
      $region52: #{tpu_custom_call.1} parent=5 // pred_fallthru
        _
      %p2774 = scmp.le.s32.totalorder 2, %s17
      // Predicated region
      $region57: #{tpu_custom_call.1} parent=5 // pred_check
        %p2775 = pneg %p2774
      $region58: #{tpu_custom_call.1} parent=5 // pred_check_branch
        %2777 = sbr.rel (%p2775) target = $region60
      $region59: #{tpu_custom_call.1} parent=5 // pred_region
        %s2778 = ssub.s32 %s17, 2
        // Predicated region
        $region61: #{tpu_custom_call.1} parent=59 // pred_check
          %p2779 = pneg %p224
        $region62: #{tpu_custom_call.1} parent=59 // pred_check_branch
          %2781 = sbr.rel (%p2779) target = $region64
        $region63: #{tpu_custom_call.1} parent=59 // pred_region
          %s2782 = sand.u32 %s209, 1
          %s2783 = scalar_lea.sflag [#allocation3], %s2782
          %s2784 = sand.u32 %s209, 1
          %s2785 = smul.addr %s2784, 32
          %s2786 = scalar_lea.vmem [#allocation2], %s2785
          %2788 = dma.done %s2783, 512
        $region64: #{tpu_custom_call.1} parent=59 // pred_fallthru
          _
      $region60: #{tpu_custom_call.1} parent=5 // pred_fallthru
        _
    $region6: #{tpu_custom_call.1} parent=1 // loop_footer
      %s21 = sadd.s32 1, %s17
    $region7: #{tpu_custom_call.1} parent=1 // loop_footer_branch
      %16 = sbr.rel target = $region3
    $region8: #{tpu_custom_call.1} parent=1 // loop_exit
      _
    %2789 = vsyncpa [#allocation3], 1
    %s2790 = scalar_lea.sflag [#allocation3], 1
    %2791 = vsyncpa %s2790, 1

</llo_original>
